<compile_context>
chip_gen: v7x
topology: tpu7x:2x2x1
jax: 0.10.0
libtpu: 0.0.40
codegen_flags: <defaults>
</compile_context>

<pallas_src>
import functools

import jax
import jax.numpy as jnp
from jax import lax
from jax.experimental import pallas as pl
from jax.experimental.pallas import tpu as pltpu

# ---- small, module-consistent sizes -----------------------------------------
B = 2          # batch
T = 8          # sequence length
K = 75         # keypoints  -> 75 * 3 = 225 = LSTM input size (fixed by module)
D = K * 3      # 225
H = 32         # hidden_size (scaled down from 256 for a small example)
C = 5          # num_classes


def _round_up(x, m):
    return ((x + m - 1) // m) * m


# ---- Pallas kernel -----------------------------------------------------------
def bilstm_attn_kernel(x_ref,        # (T*BP, DP)  bf16, rows ordered [t*BP + b]
                       w_in_ref,     # (DP, 8H)    bf16, gate-interleaved columns
                       bias_ref,     # (1, 8H)     f32,  gate-interleaved
                       w_rec_ref,    # (2H, 8H)    bf16, block-diag fwd/bwd, interleaved cols
                       attn_w_ref,   # (1, 2H)     f32   [fwd H | bwd H]
                       attn_b_ref,   # (1, 1)      f32
                       fc_w_ref,     # (2H, CP)    f32   zero-padded columns
                       fc_b_ref,     # (1, CP)     f32   zero-padded
                       out_ref):     # (BP, CP)    f32
    BP_ = out_ref.shape[0]
    G8 = w_in_ref.shape[1]
    H_ = G8 // 8
    H2 = 2 * H_
    T_ = x_ref.shape[0] // BP_

    # ---- (1) hoisted input projection: one lane-dense bf16 MXU matmul for all
    #          timesteps / both directions, bias folded in, kept as a traced
    #          value (no VMEM scratch round-trip). ----
    gin = jnp.dot(x_ref[...], w_in_ref[...],
                  preferred_element_type=jnp.float32) + bias_ref[...]
    gin = gin.reshape(T_, BP_, G8)                       # (T, BP, 8H)

    w_rec = w_rec_ref[...]                               # bf16 (2H, 8H)
    aw = attn_w_ref[...]                                 # (1, 2H)

    # column c of the interleaved gate layout belongs to the forward direction
    # iff (c mod 2H) < H  (layout: [i_f i_b | f_f f_b | g_f g_b | o_f o_b]).
    col = lax.broadcasted_iota(jnp.int32, (1, G8), 1)
    fwd_mask = (col % H2) < H_

    hcat = jnp.zeros((BP_, H2), jnp.float32)             # [hf | hb]
    ccat = jnp.zeros((BP_, H2), jnp.float32)             # [cf | cb]

    hf_t = [None] * T_
    hb_t = [None] * T_
    sf_t = [None] * T_
    sb_t = [None] * T_

    # ---- (2) fused, fully unrolled recurrence: fwd step s and bwd step T-1-s
    #          share ONE merged bf16 recurrent matmul and 2H-wide gate slices ----
    for s in range(T_):
        tb = T_ - 1 - s
        # fwd gate inputs from timestep s, bwd gate inputs from timestep T-1-s
        gate_in = jnp.where(fwd_mask, gin[s], gin[tb])    # (BP, 8H)
        gates = gate_in + jnp.dot(hcat.astype(jnp.bfloat16), w_rec,
                                  preferred_element_type=jnp.float32)

        i = jax.nn.sigmoid(gates[:, 0 * H2:1 * H2])       # [i_f | i_b]
        f = jax.nn.sigmoid(gates[:, 1 * H2:2 * H2])       # [f_f | f_b]
        g = jnp.tanh(gates[:, 2 * H2:3 * H2])             # [g_f | g_b]
        o = jax.nn.sigmoid(gates[:, 3 * H2:4 * H2])       # [o_f | o_b]
        ccat = f * ccat + i * g
        hcat = o * jnp.tanh(ccat)

        hf_t[s] = hcat[:, :H_]                            # register-resident
        hb_t[tb] = hcat[:, H_:]

        # attention-score partials folded into the latency-bound recurrence
        p = hcat * aw
        sf_t[s] = jnp.sum(p[:, :H_], axis=-1, keepdims=True)    # (BP, 1)
        sb_t[tb] = jnp.sum(p[:, H_:], axis=-1, keepdims=True)   # (BP, 1)

    # ---- (3) softmax over time + context + fc (compiler-managed values) ----
    h_all = jnp.stack(
        [jnp.concatenate([hf_t[t], hb_t[t]], axis=-1) for t in range(T_)],
        axis=0)                                            # (T, BP, 2H)
    scores = jnp.stack([sf_t[t] + sb_t[t] for t in range(T_)], axis=0)
    scores = scores + attn_b_ref[...]                      # (T, BP, 1)

    scores = scores - jnp.max(scores, axis=0, keepdims=True)
    e = jnp.exp(scores)
    w = e / jnp.sum(e, axis=0, keepdims=True)              # (T, BP, 1)

    ctx = jnp.sum(w * h_all, axis=0)                       # (BP, 2H)
    logits = (jnp.dot(ctx, fc_w_ref[...], preferred_element_type=jnp.float32)
              + fc_b_ref[...])                             # (BP, CP) lane-dense
    out_ref[...] = logits.astype(out_ref.dtype)


# TODO(synk): only the default attention_type='linear' branch is implemented;
#             the 'additive' branch (tanh(W h) @ v) is not emitted here.


# ---- one-time parameter packing (hoisted out of the per-call path) ------------
def prepare_params(params):
    H_ = params["whh_f"].shape[1]
    D_ = params["wih_f"].shape[1]
    C_ = params["fc_w"].shape[0]
    DP = _round_up(D_, 128)
    CP = _round_up(C_, 128)

    # gate-column permutation: [i_f f_f g_f o_f | i_b f_b g_b o_b]
    #                       -> [i_f i_b | f_f f_b | g_f g_b | o_f o_b]
    base = jnp.arange(H_)
    perm = jnp.concatenate(
        [jnp.concatenate([k * H_ + base, 4 * H_ + k * H_ + base])
         for k in range(4)])

    # combined fwd|bwd input projection, column-permuted, zero-padded rows, bf16
    w_in = jnp.concatenate([params["wih_f"].T, params["wih_b"].T], axis=1)[:, perm]
    w_in = jnp.pad(w_in, ((0, DP - D_), (0, 0))).astype(jnp.bfloat16)        # (DP, 8H)

    bias = jnp.concatenate([params["bih_f"] + params["bhh_f"],
                            params["bih_b"] + params["bhh_b"]])[perm][None, :]  # (1, 8H)

    # merged block-diagonal recurrent weight, column-permuted, bf16
    z = jnp.zeros((H_, 4 * H_), jnp.float32)
    w_rec = jnp.concatenate(
        [jnp.concatenate([params["whh_f"].T, z], axis=1),
         jnp.concatenate([z, params["whh_b"].T], axis=1)], axis=0)[:, perm]
    w_rec = w_rec.astype(jnp.bfloat16)                                        # (2H, 8H)

    fc_w = jnp.pad(params["fc_w"].T, ((0, 0), (0, CP - C_)))                  # (2H, CP)
    fc_b = jnp.pad(params["fc_b"], ((0, CP - C_),))[None, :]                  # (1, CP)

    return dict(
        w_in=w_in, bias=bias, w_rec=w_rec,
        attn_w=params["attn_w"].astype(jnp.float32),                          # (1, 2H)
        attn_b=params["attn_b"].reshape(1, 1).astype(jnp.float32),            # (1, 1)
        fc_w=fc_w, fc_b=fc_b)


# ---- jitted forward ------------------------------------------------------------
@functools.partial(jax.jit, static_argnames=("num_classes",))
def model_forward(x, prep, *, num_classes):
    # mimic the PyTorch `if x.dim() == 4: x = x.view(B, T, -1)`
    if x.ndim == 4:
        x = x.reshape(x.shape[0], x.shape[1], -1)
    Bq, Tq, Dq = x.shape
    DP = prep["w_in"].shape[0]
    CP = prep["fc_w"].shape[1]
    BP = _round_up(Bq, 8)        # pad batch to the sublane width

    # time-major, zero-padded, flattened to a 2-D slab for the projection matmul
    xt = jnp.transpose(x, (1, 0, 2)).astype(jnp.float32)       # (T, B, D)
    xt = jnp.pad(xt, ((0, 0), (0, BP - Bq), (0, DP - Dq)))     # (T, BP, DP)
    x2d = xt.reshape(Tq * BP, DP).astype(jnp.bfloat16)

    args = (x2d, prep["w_in"], prep["bias"], prep["w_rec"],
            prep["attn_w"], prep["attn_b"], prep["fc_w"], prep["fc_b"])

    out = pl.pallas_call(
        bilstm_attn_kernel,
        out_shape=jax.ShapeDtypeStruct((BP, CP), jnp.float32),
        in_specs=[pl.BlockSpec(memory_space=pltpu.MemorySpace.VMEM)] * len(args),
        out_specs=pl.BlockSpec(memory_space=pltpu.MemorySpace.VMEM),
    )(*args)
    return out[:Bq, :num_classes]


# ---- pure-JAX reference (mirrors the PyTorch forward, all-f32) -----------------
def reference_forward(x, params):
    if x.ndim == 4:
        x = x.reshape(x.shape[0], x.shape[1], -1)
    x = x.astype(jnp.float32)
    B_, _, _ = x.shape
    H_ = params["whh_f"].shape[1]

    def run_dir(wih, whh, bih, bhh, xs):      # xs: (T, B, D)
        def step(carry, xt):
            h, c = carry
            gates = xt @ wih.T + bih + h @ whh.T + bhh
            i = jax.nn.sigmoid(gates[:, :H_])
            f = jax.nn.sigmoid(gates[:, H_:2 * H_])
            g = jnp.tanh(gates[:, 2 * H_:3 * H_])
            o = jax.nn.sigmoid(gates[:, 3 * H_:])
            c = f * c + i * g
            h = o * jnp.tanh(c)
            return (h, c), h

        init = (jnp.zeros((B_, H_), jnp.float32), jnp.zeros((B_, H_), jnp.float32))
        _, hs = lax.scan(step, init, xs)
        return hs                              # (T, B, H)

    xs = jnp.transpose(x, (1, 0, 2))
    hf = run_dir(params["wih_f"], params["whh_f"], params["bih_f"], params["bhh_f"], xs)
    hb = run_dir(params["wih_b"], params["whh_b"], params["bih_b"], params["bhh_b"], xs[::-1])[::-1]
    lstm_out = jnp.transpose(jnp.concatenate([hf, hb], axis=-1), (1, 0, 2))  # (B, T, 2H)

    scores = jnp.einsum("btd,od->bt", lstm_out, params["attn_w"]) + params["attn_b"][0]
    wgt = jax.nn.softmax(scores, axis=1)
    ctx = jnp.sum(lstm_out * wgt[..., None], axis=1)
    return ctx @ params["fc_w"].T + params["fc_b"]


# ---- deterministic parameter init ----------------------------------------------
def init_params(key):
    ks = jax.random.split(key, 12)
    s_lstm = 1.0 / jnp.sqrt(H)
    s_attn = 1.0 / jnp.sqrt(2 * H)

    def u(k, shape, scale):
        return jax.random.uniform(k, shape, jnp.float32, -scale, scale)

    return dict(
        wih_f=u(ks[0], (4 * H, D), s_lstm), whh_f=u(ks[1], (4 * H, H), s_lstm),
        bih_f=u(ks[2], (4 * H,), s_lstm),   bhh_f=u(ks[3], (4 * H,), s_lstm),
        wih_b=u(ks[4], (4 * H, D), s_lstm), whh_b=u(ks[5], (4 * H, H), s_lstm),
        bih_b=u(ks[6], (4 * H,), s_lstm),   bhh_b=u(ks[7], (4 * H,), s_lstm),
        attn_w=u(ks[8], (1, 2 * H), s_attn), attn_b=u(ks[9], (1,), s_attn),
        fc_w=u(ks[10], (C, 2 * H), s_attn),  fc_b=u(ks[11], (C,), s_attn),
    )


if __name__ == "__main__":
    key = jax.random.PRNGKey(0)
    pkey, xkey = jax.random.split(key)
    params = init_params(pkey)

    # 4-D input like the PyTorch module expects: (batch, seq, keypoints, 3)
    x = jax.random.normal(xkey, (B, T, K, 3), dtype=jnp.float32)

    prep = prepare_params(params)             # one-time weight packing
    out = model_forward(x, prep, num_classes=C)
    out = jax.block_until_ready(out)

    ref = reference_forward(x, params)
    assert out.shape == (B, C)
    # bf16 MXU operands (input projection + recurrent dot) -> slightly looser tolerance
    assert jnp.allclose(out, ref, atol=2e-2, rtol=2e-2), (out, ref)

    print("KERNEL_OK")
</pallas_src>

<mosaic_0001>
module attributes {stable_mosaic.version = 11 : i64} {
  func.func @bilstm_attn_kernel(%arg0: memref<64x256xbf16, #tpu.memory_space<vmem>>, %arg1: memref<256x256xbf16, #tpu.memory_space<vmem>>, %arg2: memref<1x256xf32, #tpu.memory_space<vmem>>, %arg3: memref<64x256xbf16, #tpu.memory_space<vmem>>, %arg4: memref<1x64xf32, #tpu.memory_space<vmem>>, %arg5: memref<1x1xf32, #tpu.memory_space<vmem>>, %arg6: memref<64x128xf32, #tpu.memory_space<vmem>>, %arg7: memref<1x128xf32, #tpu.memory_space<vmem>>, %arg8: memref<8x128xf32, #tpu.memory_space<vmem>>) attributes {dimension_semantics = [], scalar_prefetch = 0 : i64, scratch_operands = 0 : i64, tpu.core_type = #tpu.core_type<tc>} {
    %c0 = arith.constant 0 : index
    %c0_0 = arith.constant 0 : index
    %0 = vector.load %arg0[%c0, %c0_0] : memref<64x256xbf16, #tpu.memory_space<vmem>>, vector<64x256xbf16>
    %c0_1 = arith.constant 0 : index
    %c0_2 = arith.constant 0 : index
    %1 = vector.load %arg1[%c0_1, %c0_2] : memref<256x256xbf16, #tpu.memory_space<vmem>>, vector<256x256xbf16>
    %cst = arith.constant dense<0.000000e+00> : vector<64x256xf32>
    %2 = tpu.matmul %0, %1, %cst {dimension_numbers = #tpu.dot_dimension_numbers<[1], [0], [0], [1], [0, 0, 1, 1], [], []>} : vector<64x256xbf16>, vector<256x256xbf16>, vector<64x256xf32> -> vector<64x256xf32>
    %c0_3 = arith.constant 0 : index
    %c0_4 = arith.constant 0 : index
    %3 = vector.load %arg2[%c0_3, %c0_4] : memref<1x256xf32, #tpu.memory_space<vmem>>, vector<1x256xf32>
    %4 = vector.broadcast %3 : vector<1x256xf32> to vector<64x256xf32>
    %5 = arith.addf %2, %4 : vector<64x256xf32>
    %6 = vector.shape_cast %5 : vector<64x256xf32> to vector<8x8x256xf32>
    %c0_5 = arith.constant 0 : index
    %c0_6 = arith.constant 0 : index
    %7 = vector.load %arg3[%c0_5, %c0_6] : memref<64x256xbf16, #tpu.memory_space<vmem>>, vector<64x256xbf16>
    %c0_7 = arith.constant 0 : index
    %c0_8 = arith.constant 0 : index
    %8 = vector.load %arg4[%c0_7, %c0_8] : memref<1x64xf32, #tpu.memory_space<vmem>>, vector<1x64xf32>
    %9 = tpu.iota {dimensions = array<i32: 1>} : vector<1x256xi32>
    %c64_i32 = arith.constant 64 : i32
    %c0_i32 = arith.constant 0 : i32
    %10 = arith.cmpi eq, %c64_i32, %c0_i32 : i32
    %c1_i32 = arith.constant 1 : i32
    %11 = arith.select %10, %c1_i32, %c64_i32 : i32
    %12 = vector.broadcast %11 : i32 to vector<1x256xi32>
    %13 = arith.remsi %9, %12 : vector<1x256xi32>
    %c0_i32_9 = arith.constant 0 : i32
    %14 = vector.broadcast %c0_i32_9 : i32 to vector<1x256xi32>
    %15 = arith.cmpi ne, %13, %14 : vector<1x256xi32>
    %c0_i32_10 = arith.constant 0 : i32
    %16 = vector.broadcast %c0_i32_10 : i32 to vector<1x256xi32>
    %17 = arith.cmpi slt, %13, %16 : vector<1x256xi32>
    %c0_i32_11 = arith.constant 0 : i32
    %18 = arith.cmpi slt, %11, %c0_i32_11 : i32
    %19 = vector.broadcast %18 : i1 to vector<1x256xi1>
    %20 = vector.broadcast %19 : vector<1x256xi1> to vector<1x256xi1>
    %21 = arith.xori %17, %20 : vector<1x256xi1>
    %22 = arith.andi %21, %15 : vector<1x256xi1>
    %23 = vector.broadcast %11 : i32 to vector<1x256xi32>
    %24 = arith.addi %13, %23 : vector<1x256xi32>
    %25 = arith.select %22, %24, %13 : vector<1x256xi1>, vector<1x256xi32>
    %c32_i32 = arith.constant 32 : i32
    %26 = vector.broadcast %c32_i32 : i32 to vector<1x256xi32>
    %27 = arith.cmpi slt, %25, %26 : vector<1x256xi32>
    %cst_12 = arith.constant 0.000000e+00 : f32
    %28 = vector.broadcast %cst_12 : f32 to vector<8x64xf32>
    %cst_13 = arith.constant 0.000000e+00 : f32
    %29 = vector.broadcast %cst_13 : f32 to vector<8x64xf32>
    %30 = vector.extract_strided_slice %6 {offsets = [0, 0, 0], sizes = [1, 8, 256], strides = [1, 1, 1]} : vector<8x8x256xf32> to vector<1x8x256xf32>
    %31 = vector.shape_cast %30 : vector<1x8x256xf32> to vector<8x256xf32>
    %32 = vector.extract_strided_slice %6 {offsets = [7, 0, 0], sizes = [1, 8, 256], strides = [1, 1, 1]} : vector<8x8x256xf32> to vector<1x8x256xf32>
    %33 = vector.shape_cast %32 : vector<1x8x256xf32> to vector<8x256xf32>
    %34 = vector.shape_cast %27 : vector<1x256xi1> to vector<1x256xi1>
    %35 = vector.broadcast %34 : vector<1x256xi1> to vector<8x256xi1>
    %36 = arith.select %35, %31, %33 : vector<8x256xi1>, vector<8x256xf32>
    %37 = arith.truncf %28 : vector<8x64xf32> to vector<8x64xbf16>
    %cst_14 = arith.constant dense<0.000000e+00> : vector<8x256xf32>
    %38 = tpu.matmul %37, %7, %cst_14 {dimension_numbers = #tpu.dot_dimension_numbers<[1], [0], [0], [1], [0, 0, 1, 1], [], []>} : vector<8x64xbf16>, vector<64x256xbf16>, vector<8x256xf32> -> vector<8x256xf32>
    %39 = arith.addf %36, %38 : vector<8x256xf32>
    %40 = vector.extract_strided_slice %39 {offsets = [0, 0], sizes = [8, 64], strides = [1, 1]} : vector<8x256xf32> to vector<8x64xf32>
    %41 = arith.negf %40 : vector<8x64xf32>
    %42 = math.exp %41 : vector<8x64xf32>
    %cst_15 = arith.constant 1.000000e+00 : f32
    %43 = vector.broadcast %cst_15 : f32 to vector<8x64xf32>
    %44 = arith.addf %43, %42 : vector<8x64xf32>
    %45 = arith.divf %43, %44 : vector<8x64xf32>
    %46 = vector.extract_strided_slice %39 {offsets = [0, 64], sizes = [8, 64], strides = [1, 1]} : vector<8x256xf32> to vector<8x64xf32>
    %47 = arith.negf %46 : vector<8x64xf32>
    %48 = math.exp %47 : vector<8x64xf32>
    %cst_16 = arith.constant 1.000000e+00 : f32
    %49 = vector.broadcast %cst_16 : f32 to vector<8x64xf32>
    %50 = arith.addf %49, %48 : vector<8x64xf32>
    %51 = arith.divf %49, %50 : vector<8x64xf32>
    %52 = vector.extract_strided_slice %39 {offsets = [0, 128], sizes = [8, 64], strides = [1, 1]} : vector<8x256xf32> to vector<8x64xf32>
    %53 = math.tanh %52 : vector<8x64xf32>
    %54 = vector.extract_strided_slice %39 {offsets = [0, 192], sizes = [8, 64], strides = [1, 1]} : vector<8x256xf32> to vector<8x64xf32>
    %55 = arith.negf %54 : vector<8x64xf32>
    %56 = math.exp %55 : vector<8x64xf32>
    %cst_17 = arith.constant 1.000000e+00 : f32
    %57 = vector.broadcast %cst_17 : f32 to vector<8x64xf32>
    %58 = arith.addf %57, %56 : vector<8x64xf32>
    %59 = arith.divf %57, %58 : vector<8x64xf32>
    %60 = arith.mulf %51, %29 : vector<8x64xf32>
    %61 = arith.mulf %45, %53 : vector<8x64xf32>
    %62 = arith.addf %60, %61 : vector<8x64xf32>
    %63 = math.tanh %62 : vector<8x64xf32>
    %64 = arith.mulf %59, %63 : vector<8x64xf32>
    %65 = vector.extract_strided_slice %64 {offsets = [0, 0], sizes = [8, 32], strides = [1, 1]} : vector<8x64xf32> to vector<8x32xf32>
    %66 = vector.extract_strided_slice %64 {offsets = [0, 32], sizes = [8, 32], strides = [1, 1]} : vector<8x64xf32> to vector<8x32xf32>
    %67 = vector.broadcast %8 : vector<1x64xf32> to vector<8x64xf32>
    %68 = arith.mulf %64, %67 : vector<8x64xf32>
    %69 = vector.extract_strided_slice %68 {offsets = [0, 0], sizes = [8, 32], strides = [1, 1]} : vector<8x64xf32> to vector<8x32xf32>
    %cst_18 = arith.constant dense<0.000000e+00> : vector<8xf32>
    %70 = vector.multi_reduction <add>, %69, %cst_18 [1] : vector<8x32xf32> to vector<8xf32>
    %71 = vector.shape_cast %70 : vector<8xf32> to vector<8x1xf32>
    %72 = vector.extract_strided_slice %68 {offsets = [0, 32], sizes = [8, 32], strides = [1, 1]} : vector<8x64xf32> to vector<8x32xf32>
    %cst_19 = arith.constant dense<0.000000e+00> : vector<8xf32>
    %73 = vector.multi_reduction <add>, %72, %cst_19 [1] : vector<8x32xf32> to vector<8xf32>
    %74 = vector.shape_cast %73 : vector<8xf32> to vector<8x1xf32>
    %75 = vector.extract_strided_slice %6 {offsets = [1, 0, 0], sizes = [1, 8, 256], strides = [1, 1, 1]} : vector<8x8x256xf32> to vector<1x8x256xf32>
    %76 = vector.shape_cast %75 : vector<1x8x256xf32> to vector<8x256xf32>
    %77 = vector.extract_strided_slice %6 {offsets = [6, 0, 0], sizes = [1, 8, 256], strides = [1, 1, 1]} : vector<8x8x256xf32> to vector<1x8x256xf32>
    %78 = vector.shape_cast %77 : vector<1x8x256xf32> to vector<8x256xf32>
    %79 = vector.shape_cast %27 : vector<1x256xi1> to vector<1x256xi1>
    %80 = vector.broadcast %79 : vector<1x256xi1> to vector<8x256xi1>
    %81 = arith.select %80, %76, %78 : vector<8x256xi1>, vector<8x256xf32>
    %82 = arith.truncf %64 : vector<8x64xf32> to vector<8x64xbf16>
    %cst_20 = arith.constant dense<0.000000e+00> : vector<8x256xf32>
    %83 = tpu.matmul %82, %7, %cst_20 {dimension_numbers = #tpu.dot_dimension_numbers<[1], [0], [0], [1], [0, 0, 1, 1], [], []>} : vector<8x64xbf16>, vector<64x256xbf16>, vector<8x256xf32> -> vector<8x256xf32>
    %84 = arith.addf %81, %83 : vector<8x256xf32>
    %85 = vector.extract_strided_slice %84 {offsets = [0, 0], sizes = [8, 64], strides = [1, 1]} : vector<8x256xf32> to vector<8x64xf32>
    %86 = arith.negf %85 : vector<8x64xf32>
    %87 = math.exp %86 : vector<8x64xf32>
    %cst_21 = arith.constant 1.000000e+00 : f32
    %88 = vector.broadcast %cst_21 : f32 to vector<8x64xf32>
    %89 = arith.addf %88, %87 : vector<8x64xf32>
    %90 = arith.divf %88, %89 : vector<8x64xf32>
    %91 = vector.extract_strided_slice %84 {offsets = [0, 64], sizes = [8, 64], strides = [1, 1]} : vector<8x256xf32> to vector<8x64xf32>
    %92 = arith.negf %91 : vector<8x64xf32>
    %93 = math.exp %92 : vector<8x64xf32>
    %cst_22 = arith.constant 1.000000e+00 : f32
    %94 = vector.broadcast %cst_22 : f32 to vector<8x64xf32>
    %95 = arith.addf %94, %93 : vector<8x64xf32>
    %96 = arith.divf %94, %95 : vector<8x64xf32>
    %97 = vector.extract_strided_slice %84 {offsets = [0, 128], sizes = [8, 64], strides = [1, 1]} : vector<8x256xf32> to vector<8x64xf32>
    %98 = math.tanh %97 : vector<8x64xf32>
    %99 = vector.extract_strided_slice %84 {offsets = [0, 192], sizes = [8, 64], strides = [1, 1]} : vector<8x256xf32> to vector<8x64xf32>
    %100 = arith.negf %99 : vector<8x64xf32>
    %101 = math.exp %100 : vector<8x64xf32>
    %cst_23 = arith.constant 1.000000e+00 : f32
    %102 = vector.broadcast %cst_23 : f32 to vector<8x64xf32>
    %103 = arith.addf %102, %101 : vector<8x64xf32>
    %104 = arith.divf %102, %103 : vector<8x64xf32>
    %105 = arith.mulf %96, %62 : vector<8x64xf32>
    %106 = arith.mulf %90, %98 : vector<8x64xf32>
    %107 = arith.addf %105, %106 : vector<8x64xf32>
    %108 = math.tanh %107 : vector<8x64xf32>
    %109 = arith.mulf %104, %108 : vector<8x64xf32>
    %110 = vector.extract_strided_slice %109 {offsets = [0, 0], sizes = [8, 32], strides = [1, 1]} : vector<8x64xf32> to vector<8x32xf32>
    %111 = vector.extract_strided_slice %109 {offsets = [0, 32], sizes = [8, 32], strides = [1, 1]} : vector<8x64xf32> to vector<8x32xf32>
    %112 = vector.broadcast %8 : vector<1x64xf32> to vector<8x64xf32>
    %113 = arith.mulf %109, %112 : vector<8x64xf32>
    %114 = vector.extract_strided_slice %113 {offsets = [0, 0], sizes = [8, 32], strides = [1, 1]} : vector<8x64xf32> to vector<8x32xf32>
    %cst_24 = arith.constant dense<0.000000e+00> : vector<8xf32>
    %115 = vector.multi_reduction <add>, %114, %cst_24 [1] : vector<8x32xf32> to vector<8xf32>
    %116 = vector.shape_cast %115 : vector<8xf32> to vector<8x1xf32>
    %117 = vector.extract_strided_slice %113 {offsets = [0, 32], sizes = [8, 32], strides = [1, 1]} : vector<8x64xf32> to vector<8x32xf32>
    %cst_25 = arith.constant dense<0.000000e+00> : vector<8xf32>
    %118 = vector.multi_reduction <add>, %117, %cst_25 [1] : vector<8x32xf32> to vector<8xf32>
    %119 = vector.shape_cast %118 : vector<8xf32> to vector<8x1xf32>
    %120 = vector.extract_strided_slice %6 {offsets = [2, 0, 0], sizes = [1, 8, 256], strides = [1, 1, 1]} : vector<8x8x256xf32> to vector<1x8x256xf32>
    %121 = vector.shape_cast %120 : vector<1x8x256xf32> to vector<8x256xf32>
    %122 = vector.extract_strided_slice %6 {offsets = [5, 0, 0], sizes = [1, 8, 256], strides = [1, 1, 1]} : vector<8x8x256xf32> to vector<1x8x256xf32>
    %123 = vector.shape_cast %122 : vector<1x8x256xf32> to vector<8x256xf32>
    %124 = vector.shape_cast %27 : vector<1x256xi1> to vector<1x256xi1>
    %125 = vector.broadcast %124 : vector<1x256xi1> to vector<8x256xi1>
    %126 = arith.select %125, %121, %123 : vector<8x256xi1>, vector<8x256xf32>
    %127 = arith.truncf %109 : vector<8x64xf32> to vector<8x64xbf16>
    %cst_26 = arith.constant dense<0.000000e+00> : vector<8x256xf32>
    %128 = tpu.matmul %127, %7, %cst_26 {dimension_numbers = #tpu.dot_dimension_numbers<[1], [0], [0], [1], [0, 0, 1, 1], [], []>} : vector<8x64xbf16>, vector<64x256xbf16>, vector<8x256xf32> -> vector<8x256xf32>
    %129 = arith.addf %126, %128 : vector<8x256xf32>
    %130 = vector.extract_strided_slice %129 {offsets = [0, 0], sizes = [8, 64], strides = [1, 1]} : vector<8x256xf32> to vector<8x64xf32>
    %131 = arith.negf %130 : vector<8x64xf32>
    %132 = math.exp %131 : vector<8x64xf32>
    %cst_27 = arith.constant 1.000000e+00 : f32
    %133 = vector.broadcast %cst_27 : f32 to vector<8x64xf32>
    %134 = arith.addf %133, %132 : vector<8x64xf32>
    %135 = arith.divf %133, %134 : vector<8x64xf32>
    %136 = vector.extract_strided_slice %129 {offsets = [0, 64], sizes = [8, 64], strides = [1, 1]} : vector<8x256xf32> to vector<8x64xf32>
    %137 = arith.negf %136 : vector<8x64xf32>
    %138 = math.exp %137 : vector<8x64xf32>
    %cst_28 = arith.constant 1.000000e+00 : f32
    %139 = vector.broadcast %cst_28 : f32 to vector<8x64xf32>
    %140 = arith.addf %139, %138 : vector<8x64xf32>
    %141 = arith.divf %139, %140 : vector<8x64xf32>
    %142 = vector.extract_strided_slice %129 {offsets = [0, 128], sizes = [8, 64], strides = [1, 1]} : vector<8x256xf32> to vector<8x64xf32>
    %143 = math.tanh %142 : vector<8x64xf32>
    %144 = vector.extract_strided_slice %129 {offsets = [0, 192], sizes = [8, 64], strides = [1, 1]} : vector<8x256xf32> to vector<8x64xf32>
    %145 = arith.negf %144 : vector<8x64xf32>
    %146 = math.exp %145 : vector<8x64xf32>
    %cst_29 = arith.constant 1.000000e+00 : f32
    %147 = vector.broadcast %cst_29 : f32 to vector<8x64xf32>
    %148 = arith.addf %147, %146 : vector<8x64xf32>
    %149 = arith.divf %147, %148 : vector<8x64xf32>
    %150 = arith.mulf %141, %107 : vector<8x64xf32>
    %151 = arith.mulf %135, %143 : vector<8x64xf32>
    %152 = arith.addf %150, %151 : vector<8x64xf32>
    %153 = math.tanh %152 : vector<8x64xf32>
    %154 = arith.mulf %149, %153 : vector<8x64xf32>
    %155 = vector.extract_strided_slice %154 {offsets = [0, 0], sizes = [8, 32], strides = [1, 1]} : vector<8x64xf32> to vector<8x32xf32>
    %156 = vector.extract_strided_slice %154 {offsets = [0, 32], sizes = [8, 32], strides = [1, 1]} : vector<8x64xf32> to vector<8x32xf32>
    %157 = vector.broadcast %8 : vector<1x64xf32> to vector<8x64xf32>
    %158 = arith.mulf %154, %157 : vector<8x64xf32>
    %159 = vector.extract_strided_slice %158 {offsets = [0, 0], sizes = [8, 32], strides = [1, 1]} : vector<8x64xf32> to vector<8x32xf32>
    %cst_30 = arith.constant dense<0.000000e+00> : vector<8xf32>
    %160 = vector.multi_reduction <add>, %159, %cst_30 [1] : vector<8x32xf32> to vector<8xf32>
    %161 = vector.shape_cast %160 : vector<8xf32> to vector<8x1xf32>
    %162 = vector.extract_strided_slice %158 {offsets = [0, 32], sizes = [8, 32], strides = [1, 1]} : vector<8x64xf32> to vector<8x32xf32>
    %cst_31 = arith.constant dense<0.000000e+00> : vector<8xf32>
    %163 = vector.multi_reduction <add>, %162, %cst_31 [1] : vector<8x32xf32> to vector<8xf32>
    %164 = vector.shape_cast %163 : vector<8xf32> to vector<8x1xf32>
    %165 = vector.extract_strided_slice %6 {offsets = [3, 0, 0], sizes = [1, 8, 256], strides = [1, 1, 1]} : vector<8x8x256xf32> to vector<1x8x256xf32>
    %166 = vector.shape_cast %165 : vector<1x8x256xf32> to vector<8x256xf32>
    %167 = vector.extract_strided_slice %6 {offsets = [4, 0, 0], sizes = [1, 8, 256], strides = [1, 1, 1]} : vector<8x8x256xf32> to vector<1x8x256xf32>
    %168 = vector.shape_cast %167 : vector<1x8x256xf32> to vector<8x256xf32>
    %169 = vector.shape_cast %27 : vector<1x256xi1> to vector<1x256xi1>
    %170 = vector.broadcast %169 : vector<1x256xi1> to vector<8x256xi1>
    %171 = arith.select %170, %166, %168 : vector<8x256xi1>, vector<8x256xf32>
    %172 = arith.truncf %154 : vector<8x64xf32> to vector<8x64xbf16>
    %cst_32 = arith.constant dense<0.000000e+00> : vector<8x256xf32>
    %173 = tpu.matmul %172, %7, %cst_32 {dimension_numbers = #tpu.dot_dimension_numbers<[1], [0], [0], [1], [0, 0, 1, 1], [], []>} : vector<8x64xbf16>, vector<64x256xbf16>, vector<8x256xf32> -> vector<8x256xf32>
    %174 = arith.addf %171, %173 : vector<8x256xf32>
    %175 = vector.extract_strided_slice %174 {offsets = [0, 0], sizes = [8, 64], strides = [1, 1]} : vector<8x256xf32> to vector<8x64xf32>
    %176 = arith.negf %175 : vector<8x64xf32>
    %177 = math.exp %176 : vector<8x64xf32>
    %cst_33 = arith.constant 1.000000e+00 : f32
    %178 = vector.broadcast %cst_33 : f32 to vector<8x64xf32>
    %179 = arith.addf %178, %177 : vector<8x64xf32>
    %180 = arith.divf %178, %179 : vector<8x64xf32>
    %181 = vector.extract_strided_slice %174 {offsets = [0, 64], sizes = [8, 64], strides = [1, 1]} : vector<8x256xf32> to vector<8x64xf32>
    %182 = arith.negf %181 : vector<8x64xf32>
    %183 = math.exp %182 : vector<8x64xf32>
    %cst_34 = arith.constant 1.000000e+00 : f32
    %184 = vector.broadcast %cst_34 : f32 to vector<8x64xf32>
    %185 = arith.addf %184, %183 : vector<8x64xf32>
    %186 = arith.divf %184, %185 : vector<8x64xf32>
    %187 = vector.extract_strided_slice %174 {offsets = [0, 128], sizes = [8, 64], strides = [1, 1]} : vector<8x256xf32> to vector<8x64xf32>
    %188 = math.tanh %187 : vector<8x64xf32>
    %189 = vector.extract_strided_slice %174 {offsets = [0, 192], sizes = [8, 64], strides = [1, 1]} : vector<8x256xf32> to vector<8x64xf32>
    %190 = arith.negf %189 : vector<8x64xf32>
    %191 = math.exp %190 : vector<8x64xf32>
    %cst_35 = arith.constant 1.000000e+00 : f32
    %192 = vector.broadcast %cst_35 : f32 to vector<8x64xf32>
    %193 = arith.addf %192, %191 : vector<8x64xf32>
    %194 = arith.divf %192, %193 : vector<8x64xf32>
    %195 = arith.mulf %186, %152 : vector<8x64xf32>
    %196 = arith.mulf %180, %188 : vector<8x64xf32>
    %197 = arith.addf %195, %196 : vector<8x64xf32>
    %198 = math.tanh %197 : vector<8x64xf32>
    %199 = arith.mulf %194, %198 : vector<8x64xf32>
    %200 = vector.extract_strided_slice %199 {offsets = [0, 0], sizes = [8, 32], strides = [1, 1]} : vector<8x64xf32> to vector<8x32xf32>
    %201 = vector.extract_strided_slice %199 {offsets = [0, 32], sizes = [8, 32], strides = [1, 1]} : vector<8x64xf32> to vector<8x32xf32>
    %202 = vector.broadcast %8 : vector<1x64xf32> to vector<8x64xf32>
    %203 = arith.mulf %199, %202 : vector<8x64xf32>
    %204 = vector.extract_strided_slice %203 {offsets = [0, 0], sizes = [8, 32], strides = [1, 1]} : vector<8x64xf32> to vector<8x32xf32>
    %cst_36 = arith.constant dense<0.000000e+00> : vector<8xf32>
    %205 = vector.multi_reduction <add>, %204, %cst_36 [1] : vector<8x32xf32> to vector<8xf32>
    %206 = vector.shape_cast %205 : vector<8xf32> to vector<8x1xf32>
    %207 = vector.extract_strided_slice %203 {offsets = [0, 32], sizes = [8, 32], strides = [1, 1]} : vector<8x64xf32> to vector<8x32xf32>
    %cst_37 = arith.constant dense<0.000000e+00> : vector<8xf32>
    %208 = vector.multi_reduction <add>, %207, %cst_37 [1] : vector<8x32xf32> to vector<8xf32>
    %209 = vector.shape_cast %208 : vector<8xf32> to vector<8x1xf32>
    %210 = vector.extract_strided_slice %6 {offsets = [4, 0, 0], sizes = [1, 8, 256], strides = [1, 1, 1]} : vector<8x8x256xf32> to vector<1x8x256xf32>
    %211 = vector.shape_cast %210 : vector<1x8x256xf32> to vector<8x256xf32>
    %212 = vector.extract_strided_slice %6 {offsets = [3, 0, 0], sizes = [1, 8, 256], strides = [1, 1, 1]} : vector<8x8x256xf32> to vector<1x8x256xf32>
    %213 = vector.shape_cast %212 : vector<1x8x256xf32> to vector<8x256xf32>
    %214 = vector.shape_cast %27 : vector<1x256xi1> to vector<1x256xi1>
    %215 = vector.broadcast %214 : vector<1x256xi1> to vector<8x256xi1>
    %216 = arith.select %215, %211, %213 : vector<8x256xi1>, vector<8x256xf32>
    %217 = arith.truncf %199 : vector<8x64xf32> to vector<8x64xbf16>
    %cst_38 = arith.constant dense<0.000000e+00> : vector<8x256xf32>
    %218 = tpu.matmul %217, %7, %cst_38 {dimension_numbers = #tpu.dot_dimension_numbers<[1], [0], [0], [1], [0, 0, 1, 1], [], []>} : vector<8x64xbf16>, vector<64x256xbf16>, vector<8x256xf32> -> vector<8x256xf32>
    %219 = arith.addf %216, %218 : vector<8x256xf32>
    %220 = vector.extract_strided_slice %219 {offsets = [0, 0], sizes = [8, 64], strides = [1, 1]} : vector<8x256xf32> to vector<8x64xf32>
    %221 = arith.negf %220 : vector<8x64xf32>
    %222 = math.exp %221 : vector<8x64xf32>
    %cst_39 = arith.constant 1.000000e+00 : f32
    %223 = vector.broadcast %cst_39 : f32 to vector<8x64xf32>
    %224 = arith.addf %223, %222 : vector<8x64xf32>
    %225 = arith.divf %223, %224 : vector<8x64xf32>
    %226 = vector.extract_strided_slice %219 {offsets = [0, 64], sizes = [8, 64], strides = [1, 1]} : vector<8x256xf32> to vector<8x64xf32>
    %227 = arith.negf %226 : vector<8x64xf32>
    %228 = math.exp %227 : vector<8x64xf32>
    %cst_40 = arith.constant 1.000000e+00 : f32
    %229 = vector.broadcast %cst_40 : f32 to vector<8x64xf32>
    %230 = arith.addf %229, %228 : vector<8x64xf32>
    %231 = arith.divf %229, %230 : vector<8x64xf32>
    %232 = vector.extract_strided_slice %219 {offsets = [0, 128], sizes = [8, 64], strides = [1, 1]} : vector<8x256xf32> to vector<8x64xf32>
    %233 = math.tanh %232 : vector<8x64xf32>
    %234 = vector.extract_strided_slice %219 {offsets = [0, 192], sizes = [8, 64], strides = [1, 1]} : vector<8x256xf32> to vector<8x64xf32>
    %235 = arith.negf %234 : vector<8x64xf32>
    %236 = math.exp %235 : vector<8x64xf32>
    %cst_41 = arith.constant 1.000000e+00 : f32
    %237 = vector.broadcast %cst_41 : f32 to vector<8x64xf32>
    %238 = arith.addf %237, %236 : vector<8x64xf32>
    %239 = arith.divf %237, %238 : vector<8x64xf32>
    %240 = arith.mulf %231, %197 : vector<8x64xf32>
    %241 = arith.mulf %225, %233 : vector<8x64xf32>
    %242 = arith.addf %240, %241 : vector<8x64xf32>
    %243 = math.tanh %242 : vector<8x64xf32>
    %244 = arith.mulf %239, %243 : vector<8x64xf32>
    %245 = vector.extract_strided_slice %244 {offsets = [0, 0], sizes = [8, 32], strides = [1, 1]} : vector<8x64xf32> to vector<8x32xf32>
    %246 = vector.extract_strided_slice %244 {offsets = [0, 32], sizes = [8, 32], strides = [1, 1]} : vector<8x64xf32> to vector<8x32xf32>
    %247 = vector.broadcast %8 : vector<1x64xf32> to vector<8x64xf32>
    %248 = arith.mulf %244, %247 : vector<8x64xf32>
    %249 = vector.extract_strided_slice %248 {offsets = [0, 0], sizes = [8, 32], strides = [1, 1]} : vector<8x64xf32> to vector<8x32xf32>
    %cst_42 = arith.constant dense<0.000000e+00> : vector<8xf32>
    %250 = vector.multi_reduction <add>, %249, %cst_42 [1] : vector<8x32xf32> to vector<8xf32>
    %251 = vector.shape_cast %250 : vector<8xf32> to vector<8x1xf32>
    %252 = vector.extract_strided_slice %248 {offsets = [0, 32], sizes = [8, 32], strides = [1, 1]} : vector<8x64xf32> to vector<8x32xf32>
    %cst_43 = arith.constant dense<0.000000e+00> : vector<8xf32>
    %253 = vector.multi_reduction <add>, %252, %cst_43 [1] : vector<8x32xf32> to vector<8xf32>
    %254 = vector.shape_cast %253 : vector<8xf32> to vector<8x1xf32>
    %255 = vector.extract_strided_slice %6 {offsets = [5, 0, 0], sizes = [1, 8, 256], strides = [1, 1, 1]} : vector<8x8x256xf32> to vector<1x8x256xf32>
    %256 = vector.shape_cast %255 : vector<1x8x256xf32> to vector<8x256xf32>
    %257 = vector.extract_strided_slice %6 {offsets = [2, 0, 0], sizes = [1, 8, 256], strides = [1, 1, 1]} : vector<8x8x256xf32> to vector<1x8x256xf32>
    %258 = vector.shape_cast %257 : vector<1x8x256xf32> to vector<8x256xf32>
    %259 = vector.shape_cast %27 : vector<1x256xi1> to vector<1x256xi1>
    %260 = vector.broadcast %259 : vector<1x256xi1> to vector<8x256xi1>
    %261 = arith.select %260, %256, %258 : vector<8x256xi1>, vector<8x256xf32>
    %262 = arith.truncf %244 : vector<8x64xf32> to vector<8x64xbf16>
    %cst_44 = arith.constant dense<0.000000e+00> : vector<8x256xf32>
    %263 = tpu.matmul %262, %7, %cst_44 {dimension_numbers = #tpu.dot_dimension_numbers<[1], [0], [0], [1], [0, 0, 1, 1], [], []>} : vector<8x64xbf16>, vector<64x256xbf16>, vector<8x256xf32> -> vector<8x256xf32>
    %264 = arith.addf %261, %263 : vector<8x256xf32>
    %265 = vector.extract_strided_slice %264 {offsets = [0, 0], sizes = [8, 64], strides = [1, 1]} : vector<8x256xf32> to vector<8x64xf32>
    %266 = arith.negf %265 : vector<8x64xf32>
    %267 = math.exp %266 : vector<8x64xf32>
    %cst_45 = arith.constant 1.000000e+00 : f32
    %268 = vector.broadcast %cst_45 : f32 to vector<8x64xf32>
    %269 = arith.addf %268, %267 : vector<8x64xf32>
    %270 = arith.divf %268, %269 : vector<8x64xf32>
    %271 = vector.extract_strided_slice %264 {offsets = [0, 64], sizes = [8, 64], strides = [1, 1]} : vector<8x256xf32> to vector<8x64xf32>
    %272 = arith.negf %271 : vector<8x64xf32>
    %273 = math.exp %272 : vector<8x64xf32>
    %cst_46 = arith.constant 1.000000e+00 : f32
    %274 = vector.broadcast %cst_46 : f32 to vector<8x64xf32>
    %275 = arith.addf %274, %273 : vector<8x64xf32>
    %276 = arith.divf %274, %275 : vector<8x64xf32>
    %277 = vector.extract_strided_slice %264 {offsets = [0, 128], sizes = [8, 64], strides = [1, 1]} : vector<8x256xf32> to vector<8x64xf32>
    %278 = math.tanh %277 : vector<8x64xf32>
    %279 = vector.extract_strided_slice %264 {offsets = [0, 192], sizes = [8, 64], strides = [1, 1]} : vector<8x256xf32> to vector<8x64xf32>
    %280 = arith.negf %279 : vector<8x64xf32>
    %281 = math.exp %280 : vector<8x64xf32>
    %cst_47 = arith.constant 1.000000e+00 : f32
    %282 = vector.broadcast %cst_47 : f32 to vector<8x64xf32>
    %283 = arith.addf %282, %281 : vector<8x64xf32>
    %284 = arith.divf %282, %283 : vector<8x64xf32>
    %285 = arith.mulf %276, %242 : vector<8x64xf32>
    %286 = arith.mulf %270, %278 : vector<8x64xf32>
    %287 = arith.addf %285, %286 : vector<8x64xf32>
    %288 = math.tanh %287 : vector<8x64xf32>
    %289 = arith.mulf %284, %288 : vector<8x64xf32>
    %290 = vector.extract_strided_slice %289 {offsets = [0, 0], sizes = [8, 32], strides = [1, 1]} : vector<8x64xf32> to vector<8x32xf32>
    %291 = vector.extract_strided_slice %289 {offsets = [0, 32], sizes = [8, 32], strides = [1, 1]} : vector<8x64xf32> to vector<8x32xf32>
    %292 = vector.broadcast %8 : vector<1x64xf32> to vector<8x64xf32>
    %293 = arith.mulf %289, %292 : vector<8x64xf32>
    %294 = vector.extract_strided_slice %293 {offsets = [0, 0], sizes = [8, 32], strides = [1, 1]} : vector<8x64xf32> to vector<8x32xf32>
    %cst_48 = arith.constant dense<0.000000e+00> : vector<8xf32>
    %295 = vector.multi_reduction <add>, %294, %cst_48 [1] : vector<8x32xf32> to vector<8xf32>
    %296 = vector.shape_cast %295 : vector<8xf32> to vector<8x1xf32>
    %297 = vector.extract_strided_slice %293 {offsets = [0, 32], sizes = [8, 32], strides = [1, 1]} : vector<8x64xf32> to vector<8x32xf32>
    %cst_49 = arith.constant dense<0.000000e+00> : vector<8xf32>
    %298 = vector.multi_reduction <add>, %297, %cst_49 [1] : vector<8x32xf32> to vector<8xf32>
    %299 = vector.shape_cast %298 : vector<8xf32> to vector<8x1xf32>
    %300 = vector.extract_strided_slice %6 {offsets = [6, 0, 0], sizes = [1, 8, 256], strides = [1, 1, 1]} : vector<8x8x256xf32> to vector<1x8x256xf32>
    %301 = vector.shape_cast %300 : vector<1x8x256xf32> to vector<8x256xf32>
    %302 = vector.extract_strided_slice %6 {offsets = [1, 0, 0], sizes = [1, 8, 256], strides = [1, 1, 1]} : vector<8x8x256xf32> to vector<1x8x256xf32>
    %303 = vector.shape_cast %302 : vector<1x8x256xf32> to vector<8x256xf32>
    %304 = vector.shape_cast %27 : vector<1x256xi1> to vector<1x256xi1>
    %305 = vector.broadcast %304 : vector<1x256xi1> to vector<8x256xi1>
    %306 = arith.select %305, %301, %303 : vector<8x256xi1>, vector<8x256xf32>
    %307 = arith.truncf %289 : vector<8x64xf32> to vector<8x64xbf16>
    %cst_50 = arith.constant dense<0.000000e+00> : vector<8x256xf32>
    %308 = tpu.matmul %307, %7, %cst_50 {dimension_numbers = #tpu.dot_dimension_numbers<[1], [0], [0], [1], [0, 0, 1, 1], [], []>} : vector<8x64xbf16>, vector<64x256xbf16>, vector<8x256xf32> -> vector<8x256xf32>
    %309 = arith.addf %306, %308 : vector<8x256xf32>
    %310 = vector.extract_strided_slice %309 {offsets = [0, 0], sizes = [8, 64], strides = [1, 1]} : vector<8x256xf32> to vector<8x64xf32>
    %311 = arith.negf %310 : vector<8x64xf32>
    %312 = math.exp %311 : vector<8x64xf32>
    %cst_51 = arith.constant 1.000000e+00 : f32
    %313 = vector.broadcast %cst_51 : f32 to vector<8x64xf32>
    %314 = arith.addf %313, %312 : vector<8x64xf32>
    %315 = arith.divf %313, %314 : vector<8x64xf32>
    %316 = vector.extract_strided_slice %309 {offsets = [0, 64], sizes = [8, 64], strides = [1, 1]} : vector<8x256xf32> to vector<8x64xf32>
    %317 = arith.negf %316 : vector<8x64xf32>
    %318 = math.exp %317 : vector<8x64xf32>
    %cst_52 = arith.constant 1.000000e+00 : f32
    %319 = vector.broadcast %cst_52 : f32 to vector<8x64xf32>
    %320 = arith.addf %319, %318 : vector<8x64xf32>
    %321 = arith.divf %319, %320 : vector<8x64xf32>
    %322 = vector.extract_strided_slice %309 {offsets = [0, 128], sizes = [8, 64], strides = [1, 1]} : vector<8x256xf32> to vector<8x64xf32>
    %323 = math.tanh %322 : vector<8x64xf32>
    %324 = vector.extract_strided_slice %309 {offsets = [0, 192], sizes = [8, 64], strides = [1, 1]} : vector<8x256xf32> to vector<8x64xf32>
    %325 = arith.negf %324 : vector<8x64xf32>
    %326 = math.exp %325 : vector<8x64xf32>
    %cst_53 = arith.constant 1.000000e+00 : f32
    %327 = vector.broadcast %cst_53 : f32 to vector<8x64xf32>
    %328 = arith.addf %327, %326 : vector<8x64xf32>
    %329 = arith.divf %327, %328 : vector<8x64xf32>
    %330 = arith.mulf %321, %287 : vector<8x64xf32>
    %331 = arith.mulf %315, %323 : vector<8x64xf32>
    %332 = arith.addf %330, %331 : vector<8x64xf32>
    %333 = math.tanh %332 : vector<8x64xf32>
    %334 = arith.mulf %329, %333 : vector<8x64xf32>
    %335 = vector.extract_strided_slice %334 {offsets = [0, 0], sizes = [8, 32], strides = [1, 1]} : vector<8x64xf32> to vector<8x32xf32>
    %336 = vector.extract_strided_slice %334 {offsets = [0, 32], sizes = [8, 32], strides = [1, 1]} : vector<8x64xf32> to vector<8x32xf32>
    %337 = vector.broadcast %8 : vector<1x64xf32> to vector<8x64xf32>
    %338 = arith.mulf %334, %337 : vector<8x64xf32>
    %339 = vector.extract_strided_slice %338 {offsets = [0, 0], sizes = [8, 32], strides = [1, 1]} : vector<8x64xf32> to vector<8x32xf32>
    %cst_54 = arith.constant dense<0.000000e+00> : vector<8xf32>
    %340 = vector.multi_reduction <add>, %339, %cst_54 [1] : vector<8x32xf32> to vector<8xf32>
    %341 = vector.shape_cast %340 : vector<8xf32> to vector<8x1xf32>
    %342 = vector.extract_strided_slice %338 {offsets = [0, 32], sizes = [8, 32], strides = [1, 1]} : vector<8x64xf32> to vector<8x32xf32>
    %cst_55 = arith.constant dense<0.000000e+00> : vector<8xf32>
    %343 = vector.multi_reduction <add>, %342, %cst_55 [1] : vector<8x32xf32> to vector<8xf32>
    %344 = vector.shape_cast %343 : vector<8xf32> to vector<8x1xf32>
    %345 = vector.extract_strided_slice %6 {offsets = [7, 0, 0], sizes = [1, 8, 256], strides = [1, 1, 1]} : vector<8x8x256xf32> to vector<1x8x256xf32>
    %346 = vector.shape_cast %345 : vector<1x8x256xf32> to vector<8x256xf32>
    %347 = vector.extract_strided_slice %6 {offsets = [0, 0, 0], sizes = [1, 8, 256], strides = [1, 1, 1]} : vector<8x8x256xf32> to vector<1x8x256xf32>
    %348 = vector.shape_cast %347 : vector<1x8x256xf32> to vector<8x256xf32>
    %349 = vector.shape_cast %27 : vector<1x256xi1> to vector<1x256xi1>
    %350 = vector.broadcast %349 : vector<1x256xi1> to vector<8x256xi1>
    %351 = arith.select %350, %346, %348 : vector<8x256xi1>, vector<8x256xf32>
    %352 = arith.truncf %334 : vector<8x64xf32> to vector<8x64xbf16>
    %cst_56 = arith.constant dense<0.000000e+00> : vector<8x256xf32>
    %353 = tpu.matmul %352, %7, %cst_56 {dimension_numbers = #tpu.dot_dimension_numbers<[1], [0], [0], [1], [0, 0, 1, 1], [], []>} : vector<8x64xbf16>, vector<64x256xbf16>, vector<8x256xf32> -> vector<8x256xf32>
    %354 = arith.addf %351, %353 : vector<8x256xf32>
    %355 = vector.extract_strided_slice %354 {offsets = [0, 0], sizes = [8, 64], strides = [1, 1]} : vector<8x256xf32> to vector<8x64xf32>
    %356 = arith.negf %355 : vector<8x64xf32>
    %357 = math.exp %356 : vector<8x64xf32>
    %cst_57 = arith.constant 1.000000e+00 : f32
    %358 = vector.broadcast %cst_57 : f32 to vector<8x64xf32>
    %359 = arith.addf %358, %357 : vector<8x64xf32>
    %360 = arith.divf %358, %359 : vector<8x64xf32>
    %361 = vector.extract_strided_slice %354 {offsets = [0, 64], sizes = [8, 64], strides = [1, 1]} : vector<8x256xf32> to vector<8x64xf32>
    %362 = arith.negf %361 : vector<8x64xf32>
    %363 = math.exp %362 : vector<8x64xf32>
    %cst_58 = arith.constant 1.000000e+00 : f32
    %364 = vector.broadcast %cst_58 : f32 to vector<8x64xf32>
    %365 = arith.addf %364, %363 : vector<8x64xf32>
    %366 = arith.divf %364, %365 : vector<8x64xf32>
    %367 = vector.extract_strided_slice %354 {offsets = [0, 128], sizes = [8, 64], strides = [1, 1]} : vector<8x256xf32> to vector<8x64xf32>
    %368 = math.tanh %367 : vector<8x64xf32>
    %369 = vector.extract_strided_slice %354 {offsets = [0, 192], sizes = [8, 64], strides = [1, 1]} : vector<8x256xf32> to vector<8x64xf32>
    %370 = arith.negf %369 : vector<8x64xf32>
    %371 = math.exp %370 : vector<8x64xf32>
    %cst_59 = arith.constant 1.000000e+00 : f32
    %372 = vector.broadcast %cst_59 : f32 to vector<8x64xf32>
    %373 = arith.addf %372, %371 : vector<8x64xf32>
    %374 = arith.divf %372, %373 : vector<8x64xf32>
    %375 = arith.mulf %366, %332 : vector<8x64xf32>
    %376 = arith.mulf %360, %368 : vector<8x64xf32>
    %377 = arith.addf %375, %376 : vector<8x64xf32>
    %378 = math.tanh %377 : vector<8x64xf32>
    %379 = arith.mulf %374, %378 : vector<8x64xf32>
    %380 = vector.extract_strided_slice %379 {offsets = [0, 0], sizes = [8, 32], strides = [1, 1]} : vector<8x64xf32> to vector<8x32xf32>
    %381 = vector.extract_strided_slice %379 {offsets = [0, 32], sizes = [8, 32], strides = [1, 1]} : vector<8x64xf32> to vector<8x32xf32>
    %382 = vector.broadcast %8 : vector<1x64xf32> to vector<8x64xf32>
    %383 = arith.mulf %379, %382 : vector<8x64xf32>
    %384 = vector.extract_strided_slice %383 {offsets = [0, 0], sizes = [8, 32], strides = [1, 1]} : vector<8x64xf32> to vector<8x32xf32>
    %cst_60 = arith.constant dense<0.000000e+00> : vector<8xf32>
    %385 = vector.multi_reduction <add>, %384, %cst_60 [1] : vector<8x32xf32> to vector<8xf32>
    %386 = vector.shape_cast %385 : vector<8xf32> to vector<8x1xf32>
    %387 = vector.extract_strided_slice %383 {offsets = [0, 32], sizes = [8, 32], strides = [1, 1]} : vector<8x64xf32> to vector<8x32xf32>
    %cst_61 = arith.constant dense<0.000000e+00> : vector<8xf32>
    %388 = vector.multi_reduction <add>, %387, %cst_61 [1] : vector<8x32xf32> to vector<8xf32>
    %389 = vector.shape_cast %388 : vector<8xf32> to vector<8x1xf32>
    %390 = tpu.concatenate %65, %381 in 1 : vector<8x32xf32>, vector<8x32xf32> -> vector<8x64xf32>
    %391 = tpu.concatenate %110, %336 in 1 : vector<8x32xf32>, vector<8x32xf32> -> vector<8x64xf32>
    %392 = tpu.concatenate %155, %291 in 1 : vector<8x32xf32>, vector<8x32xf32> -> vector<8x64xf32>
    %393 = tpu.concatenate %200, %246 in 1 : vector<8x32xf32>, vector<8x32xf32> -> vector<8x64xf32>
    %394 = tpu.concatenate %245, %201 in 1 : vector<8x32xf32>, vector<8x32xf32> -> vector<8x64xf32>
    %395 = tpu.concatenate %290, %156 in 1 : vector<8x32xf32>, vector<8x32xf32> -> vector<8x64xf32>
    %396 = tpu.concatenate %335, %111 in 1 : vector<8x32xf32>, vector<8x32xf32> -> vector<8x64xf32>
    %397 = tpu.concatenate %380, %66 in 1 : vector<8x32xf32>, vector<8x32xf32> -> vector<8x64xf32>
    %398 = vector.shape_cast %390 : vector<8x64xf32> to vector<1x8x64xf32>
    %399 = vector.shape_cast %391 : vector<8x64xf32> to vector<1x8x64xf32>
    %400 = vector.shape_cast %392 : vector<8x64xf32> to vector<1x8x64xf32>
    %401 = vector.shape_cast %393 : vector<8x64xf32> to vector<1x8x64xf32>
    %402 = vector.shape_cast %394 : vector<8x64xf32> to vector<1x8x64xf32>
    %403 = vector.shape_cast %395 : vector<8x64xf32> to vector<1x8x64xf32>
    %404 = vector.shape_cast %396 : vector<8x64xf32> to vector<1x8x64xf32>
    %405 = vector.shape_cast %397 : vector<8x64xf32> to vector<1x8x64xf32>
    %406 = tpu.concatenate %398, %399, %400, %401, %402, %403, %404, %405 in 0 : vector<1x8x64xf32>, vector<1x8x64xf32>, vector<1x8x64xf32>, vector<1x8x64xf32>, vector<1x8x64xf32>, vector<1x8x64xf32>, vector<1x8x64xf32>, vector<1x8x64xf32> -> vector<8x8x64xf32>
    %407 = arith.addf %71, %389 : vector<8x1xf32>
    %408 = arith.addf %116, %344 : vector<8x1xf32>
    %409 = arith.addf %161, %299 : vector<8x1xf32>
    %410 = arith.addf %206, %254 : vector<8x1xf32>
    %411 = arith.addf %251, %209 : vector<8x1xf32>
    %412 = arith.addf %296, %164 : vector<8x1xf32>
    %413 = arith.addf %341, %119 : vector<8x1xf32>
    %414 = arith.addf %386, %74 : vector<8x1xf32>
    %415 = vector.shape_cast %407 : vector<8x1xf32> to vector<1x8x1xf32>
    %416 = vector.shape_cast %408 : vector<8x1xf32> to vector<1x8x1xf32>
    %417 = vector.shape_cast %409 : vector<8x1xf32> to vector<1x8x1xf32>
    %418 = vector.shape_cast %410 : vector<8x1xf32> to vector<1x8x1xf32>
    %419 = vector.shape_cast %411 : vector<8x1xf32> to vector<1x8x1xf32>
    %420 = vector.shape_cast %412 : vector<8x1xf32> to vector<1x8x1xf32>
    %421 = vector.shape_cast %413 : vector<8x1xf32> to vector<1x8x1xf32>
    %422 = vector.shape_cast %414 : vector<8x1xf32> to vector<1x8x1xf32>
    %423 = tpu.concatenate %415, %416, %417, %418, %419, %420, %421, %422 in 0 : vector<1x8x1xf32>, vector<1x8x1xf32>, vector<1x8x1xf32>, vector<1x8x1xf32>, vector<1x8x1xf32>, vector<1x8x1xf32>, vector<1x8x1xf32>, vector<1x8x1xf32> -> vector<8x8x1xf32>
    %c0_62 = arith.constant 0 : index
    %c0_63 = arith.constant 0 : index
    %424 = vector.load %arg5[%c0_62, %c0_63] : memref<1x1xf32, #tpu.memory_space<vmem>>, vector<1x1xf32>
    %425 = vector.shape_cast %424 : vector<1x1xf32> to vector<1x1x1xf32>
    %426 = vector.broadcast %425 : vector<1x1x1xf32> to vector<8x8x1xf32>
    %427 = arith.addf %423, %426 : vector<8x8x1xf32>
    %cst_64 = arith.constant dense<0xFF800000> : vector<8x1xf32>
    %428 = vector.multi_reduction <maximumf>, %427, %cst_64 [0] : vector<8x8x1xf32> to vector<8x1xf32>
    %429 = vector.shape_cast %428 : vector<8x1xf32> to vector<1x8x1xf32>
    %430 = vector.broadcast %429 : vector<1x8x1xf32> to vector<8x8x1xf32>
    %431 = arith.subf %427, %430 : vector<8x8x1xf32>
    %432 = math.exp %431 : vector<8x8x1xf32>
    %cst_65 = arith.constant dense<0.000000e+00> : vector<8x1xf32>
    %433 = vector.multi_reduction <add>, %432, %cst_65 [0] : vector<8x8x1xf32> to vector<8x1xf32>
    %434 = vector.shape_cast %433 : vector<8x1xf32> to vector<1x8x1xf32>
    %435 = vector.broadcast %434 : vector<1x8x1xf32> to vector<8x8x1xf32>
    %436 = arith.divf %432, %435 : vector<8x8x1xf32>
    %437 = vector.broadcast %436 : vector<8x8x1xf32> to vector<8x8x64xf32>
    %438 = arith.mulf %437, %406 : vector<8x8x64xf32>
    %cst_66 = arith.constant dense<0.000000e+00> : vector<8x64xf32>
    %439 = vector.multi_reduction <add>, %438, %cst_66 [0] : vector<8x8x64xf32> to vector<8x64xf32>
    %c0_67 = arith.constant 0 : index
    %c0_68 = arith.constant 0 : index
    %440 = vector.load %arg6[%c0_67, %c0_68] : memref<64x128xf32, #tpu.memory_space<vmem>>, vector<64x128xf32>
    %cst_69 = arith.constant dense<0.000000e+00> : vector<8x128xf32>
    %441 = tpu.matmul %439, %440, %cst_69 {dimension_numbers = #tpu.dot_dimension_numbers<[1], [0], [0], [1], [0, 0, 1, 1], [], []>} : vector<8x64xf32>, vector<64x128xf32>, vector<8x128xf32> -> vector<8x128xf32>
    %c0_70 = arith.constant 0 : index
    %c0_71 = arith.constant 0 : index
    %442 = vector.load %arg7[%c0_70, %c0_71] : memref<1x128xf32, #tpu.memory_space<vmem>>, vector<1x128xf32>
    %443 = vector.broadcast %442 : vector<1x128xf32> to vector<8x128xf32>
    %444 = arith.addf %441, %443 : vector<8x128xf32>
    %c0_72 = arith.constant 0 : index
    %c0_73 = arith.constant 0 : index
    %445 = vector.load %arg8[%c0_72, %c0_73] : memref<8x128xf32, #tpu.memory_space<vmem>>, vector<8x128xf32>
    tpu.vector_store %arg8[%c0_72, %c0_73], %444 {strides = array<i32>} : memref<8x128xf32, #tpu.memory_space<vmem>>, vector<8x128xf32>,
    return
  }
}

</mosaic_0001>

<llo_original>
// kernel: model_forward.1
$region0: #{model_forward.1}
  #allocation0 [shape = 'u32[]', space=smem, size = 0x4, offset = 0x4, fixed_abs, tag = 'smem constant byte address 0x4 - core index']
  #allocation1 [shape = 'u32[144,128]{1,0:T(1,128)}', space=vmem, size = 0x12000, scoped, tag = 'internal scratch']
  #allocation2 [shape = 'f32[1,1]{1,0:T(1,128)S(1)}', space=vmem, size = 0x200, scoped, tag = 'scoped memory for model_forward.1']
  %s0 = inlined_call_operand.vmem [shape: bf16[64,256], index: 0, kind: input, shape index: {}]
  %s1 = inlined_call_operand.vmem [shape: bf16[256,256], index: 1, kind: input, shape index: {}]
  %s2 = inlined_call_operand.vmem [shape: f32[1,256], index: 2, kind: input, shape index: {}]
  %s3 = inlined_call_operand.vmem [shape: bf16[64,256], index: 3, kind: input, shape index: {}]
  %s4 = inlined_call_operand.vmem [shape: f32[1,64], index: 4, kind: input, shape index: {}]
  %s5 = inlined_call_operand.<no memory space> [shape: f32[1,1], index: 5, kind: input, shape index: {}]
  %s6 = inlined_call_operand.vmem [shape: f32[64,128], index: 6, kind: input, shape index: {}]
  %s7 = inlined_call_operand.vmem [shape: f32[1,128], index: 7, kind: input, shape index: {}]
  %s8 = inlined_call_operand.vmem [shape: f32[8,128], index: 8, kind: output, shape index: {}]
  %s9 = sld [smem:[#allocation0]]
  $region42: #{model_forward.1} parent=0
    _
  %s11 = ssub.s32 1, %s9
  %s12 = scalar_select 0, %s11, %s9
  %v13 = vstv %s5
  %14 = vst [vmem:[#allocation2] sm:$0x1] %v13
  // Predicated region
  $region2: #{model_forward.1} parent=0 // pred_check
    _
  $region3: #{model_forward.1} parent=0 // pred_check_branch
    %16 = sbr.rel (0) target = $region5
  $region4: #{model_forward.1} parent=0 // pred_region
    _
  $region5: #{model_forward.1} parent=0 // pred_fallthru
    _
  // Predicated region
  $region6: #{model_forward.1} parent=0 // pred_check
    _
  $region7: #{model_forward.1} parent=0 // pred_check_branch
    %18 = sbr.rel (0) target = $region9
  $region8: #{model_forward.1} parent=0 // pred_region
    _
  $region9: #{model_forward.1} parent=0 // pred_fallthru
    _
  // Predicated region
  $region10: #{model_forward.1} parent=0 // pred_check
    _
  $region11: #{model_forward.1} parent=0 // pred_check_branch
    %20 = sbr.rel (0) target = $region13
  $region12: #{model_forward.1} parent=0 // pred_region
    _
  $region13: #{model_forward.1} parent=0 // pred_fallthru
    _
  // Predicated region
  $region14: #{model_forward.1} parent=0 // pred_check
    _
  $region15: #{model_forward.1} parent=0 // pred_check_branch
    %22 = sbr.rel (0) target = $region17
  $region16: #{model_forward.1} parent=0 // pred_region
    _
  $region17: #{model_forward.1} parent=0 // pred_fallthru
    _
  // Predicated region
  $region18: #{model_forward.1} parent=0 // pred_check
    _
  $region19: #{model_forward.1} parent=0 // pred_check_branch
    %24 = sbr.rel (0) target = $region21
  $region20: #{model_forward.1} parent=0 // pred_region
    _
  $region21: #{model_forward.1} parent=0 // pred_fallthru
    _
  // Predicated region
  $region22: #{model_forward.1} parent=0 // pred_check
    _
  $region23: #{model_forward.1} parent=0 // pred_check_branch
    %26 = sbr.rel (0) target = $region25
  $region24: #{model_forward.1} parent=0 // pred_region
    _
  $region25: #{model_forward.1} parent=0 // pred_fallthru
    _
  // Predicated region
  $region26: #{model_forward.1} parent=0 // pred_check
    _
  $region27: #{model_forward.1} parent=0 // pred_check_branch
    %28 = sbr.rel (0) target = $region29
  $region28: #{model_forward.1} parent=0 // pred_region
    _
  $region29: #{model_forward.1} parent=0 // pred_fallthru
    _
  // Predicated region
  $region30: #{model_forward.1} parent=0 // pred_check
    _
  $region31: #{model_forward.1} parent=0 // pred_check_branch
    %30 = sbr.rel (0) target = $region33
  $region32: #{model_forward.1} parent=0 // pred_region
    _
  $region33: #{model_forward.1} parent=0 // pred_fallthru
    _
  %v32 = vld [vmem:[%s0] sm:$0xff]
  %v33 = vld [vmem:[%s0 + $0x8] sm:$0xff]
  %v34 = vld [vmem:[%s0 + $0x10] sm:$0xff]
  %v35 = vld [vmem:[%s0 + $0x18] sm:$0xff]
  %v36 = vld [vmem:[%s0 + $0x20] sm:$0xff]
  %v37 = vld [vmem:[%s0 + $0x28] sm:$0xff]
  %v38 = vld [vmem:[%s0 + $0x30] sm:$0xff]
  %v39 = vld [vmem:[%s0 + $0x38] sm:$0xff]
  %v40 = vld [vmem:[%s1] sm:$0xff]
  %v41 = vld [vmem:[%s1 + $0x8] sm:$0xff]
  %v42 = vld [vmem:[%s1 + $0x10] sm:$0xff]
  %v43 = vld [vmem:[%s1 + $0x18] sm:$0xff]
  %v44 = vld [vmem:[%s1 + $0x20] sm:$0xff]
  %v45 = vld [vmem:[%s1 + $0x28] sm:$0xff]
  %v46 = vld [vmem:[%s1 + $0x30] sm:$0xff]
  %v47 = vld [vmem:[%s1 + $0x38] sm:$0xff]
  %v48 = vld [vmem:[%s1 + $0x40] sm:$0xff]
  %v49 = vld [vmem:[%s1 + $0x48] sm:$0xff]
  %v50 = vld [vmem:[%s1 + $0x50] sm:$0xff]
  %v51 = vld [vmem:[%s1 + $0x58] sm:$0xff]
  %v52 = vld [vmem:[%s1 + $0x60] sm:$0xff]
  %v53 = vld [vmem:[%s1 + $0x68] sm:$0xff]
  %v54 = vld [vmem:[%s1 + $0x70] sm:$0xff]
  %v55 = vld [vmem:[%s1 + $0x78] sm:$0xff]
  %v56 = vld [vmem:[%s1 + $0x80] sm:$0xff]
  %v57 = vld [vmem:[%s1 + $0x88] sm:$0xff]
  %v58 = vld [vmem:[%s1 + $0x90] sm:$0xff]
  %v59 = vld [vmem:[%s1 + $0x98] sm:$0xff]
  %v60 = vld [vmem:[%s1 + $0xa0] sm:$0xff]
  %v61 = vld [vmem:[%s1 + $0xa8] sm:$0xff]
  %v62 = vld [vmem:[%s1 + $0xb0] sm:$0xff]
  %v63 = vld [vmem:[%s1 + $0xb8] sm:$0xff]
  %v64 = vld [vmem:[%s1 + $0xc0] sm:$0xff]
  %v65 = vld [vmem:[%s1 + $0xc8] sm:$0xff]
  %v66 = vld [vmem:[%s1 + $0xd0] sm:$0xff]
  %v67 = vld [vmem:[%s1 + $0xd8] sm:$0xff]
  %v68 = vld [vmem:[%s1 + $0xe0] sm:$0xff]
  %v69 = vld [vmem:[%s1 + $0xe8] sm:$0xff]
  %v70 = vld [vmem:[%s1 + $0xf0] sm:$0xff]
  %v71 = vld [vmem:[%s1 + $0xf8] sm:$0xff]
  %v72 = vld [vmem:[%s2] sm:$0x3]
  %v74 = vlaneseq
  %v75 = vshrl.u32 %v74, 7
  %v76 = vsub.s32 0, %v75
  %v77 = vrot.slane %v72, %v76
  %v78 = vlaneseq
  %v79 = vshrl.u32 %v78, 7
  %v80 = vsub.s32 1, %v79
  %v81 = vrot.slane %v72, %v80
  %v92 = vunpack.c.l.b16 %v32
  %v93 = vunpack.c.h.b16 %v32
  %v94 = vunpack.c.l.b16 %v33
  %v95 = vunpack.c.h.b16 %v33
  %v96 = vunpack.c.l.b16 %v34
  %v97 = vunpack.c.h.b16 %v34
  %v98 = vunpack.c.l.b16 %v35
  %v99 = vunpack.c.h.b16 %v35
  %v100 = vunpack.c.l.b16 %v36
  %v101 = vunpack.c.h.b16 %v36
  %v102 = vunpack.c.l.b16 %v37
  %v103 = vunpack.c.h.b16 %v37
  %v104 = vunpack.c.l.b16 %v38
  %v105 = vunpack.c.h.b16 %v38
  %v106 = vunpack.c.l.b16 %v39
  %v107 = vunpack.c.h.b16 %v39
  %v108 = vpack.c.b16 %v94, %v92
  %v109 = vpack.c.b16 %v95, %v93
  %v110 = vpack.c.b16 %v98, %v96
  %v111 = vpack.c.b16 %v99, %v97
  %v112 = vpack.c.b16 %v102, %v100
  %v113 = vpack.c.b16 %v103, %v101
  %v114 = vpack.c.b16 %v106, %v104
  %v115 = vpack.c.b16 %v107, %v105
  %v156 = vunpack.c.l.b16 %v40
  %v157 = vunpack.c.h.b16 %v40
  %v158 = vunpack.c.l.b16 %v41
  %v159 = vunpack.c.h.b16 %v41
  %v160 = vunpack.c.l.b16 %v42
  %v161 = vunpack.c.h.b16 %v42
  %v162 = vunpack.c.l.b16 %v43
  %v163 = vunpack.c.h.b16 %v43
  %v164 = vunpack.c.l.b16 %v44
  %v165 = vunpack.c.h.b16 %v44
  %v166 = vunpack.c.l.b16 %v45
  %v167 = vunpack.c.h.b16 %v45
  %v168 = vunpack.c.l.b16 %v46
  %v169 = vunpack.c.h.b16 %v46
  %v170 = vunpack.c.l.b16 %v47
  %v171 = vunpack.c.h.b16 %v47
  %v172 = vunpack.c.l.b16 %v48
  %v173 = vunpack.c.h.b16 %v48
  %v174 = vunpack.c.l.b16 %v49
  %v175 = vunpack.c.h.b16 %v49
  %v176 = vunpack.c.l.b16 %v50
  %v177 = vunpack.c.h.b16 %v50
  %v178 = vunpack.c.l.b16 %v51
  %v179 = vunpack.c.h.b16 %v51
  %v180 = vunpack.c.l.b16 %v52
  %v181 = vunpack.c.h.b16 %v52
  %v182 = vunpack.c.l.b16 %v53
  %v183 = vunpack.c.h.b16 %v53
  %v184 = vunpack.c.l.b16 %v54
  %v185 = vunpack.c.h.b16 %v54
  %v186 = vunpack.c.l.b16 %v55
  %v187 = vunpack.c.h.b16 %v55
  %v188 = vunpack.c.l.b16 %v56
  %v189 = vunpack.c.h.b16 %v56
  %v190 = vunpack.c.l.b16 %v57
  %v191 = vunpack.c.h.b16 %v57
  %v192 = vunpack.c.l.b16 %v58
  %v193 = vunpack.c.h.b16 %v58
  %v194 = vunpack.c.l.b16 %v59
  %v195 = vunpack.c.h.b16 %v59
  %v196 = vunpack.c.l.b16 %v60
  %v197 = vunpack.c.h.b16 %v60
  %v198 = vunpack.c.l.b16 %v61
  %v199 = vunpack.c.h.b16 %v61
  %v200 = vunpack.c.l.b16 %v62
  %v201 = vunpack.c.h.b16 %v62
  %v202 = vunpack.c.l.b16 %v63
  %v203 = vunpack.c.h.b16 %v63
  %v204 = vunpack.c.l.b16 %v64
  %v205 = vunpack.c.h.b16 %v64
  %v206 = vunpack.c.l.b16 %v65
  %v207 = vunpack.c.h.b16 %v65
  %v208 = vunpack.c.l.b16 %v66
  %v209 = vunpack.c.h.b16 %v66
  %v210 = vunpack.c.l.b16 %v67
  %v211 = vunpack.c.h.b16 %v67
  %v212 = vunpack.c.l.b16 %v68
  %v213 = vunpack.c.h.b16 %v68
  %v214 = vunpack.c.l.b16 %v69
  %v215 = vunpack.c.h.b16 %v69
  %v216 = vunpack.c.l.b16 %v70
  %v217 = vunpack.c.h.b16 %v70
  %v218 = vunpack.c.l.b16 %v71
  %v219 = vunpack.c.h.b16 %v71
  %v220 = vpack.c.b16 %v158, %v156
  %v221 = vpack.c.b16 %v159, %v157
  %v222 = vpack.c.b16 %v162, %v160
  %v223 = vpack.c.b16 %v163, %v161
  %v224 = vpack.c.b16 %v166, %v164
  %v225 = vpack.c.b16 %v167, %v165
  %v226 = vpack.c.b16 %v170, %v168
  %v227 = vpack.c.b16 %v171, %v169
  %v228 = vpack.c.b16 %v174, %v172
  %v229 = vpack.c.b16 %v175, %v173
  %v230 = vpack.c.b16 %v178, %v176
  %v231 = vpack.c.b16 %v179, %v177
  %v232 = vpack.c.b16 %v182, %v180
  %v233 = vpack.c.b16 %v183, %v181
  %v234 = vpack.c.b16 %v186, %v184
  %v235 = vpack.c.b16 %v187, %v185
  %v236 = vpack.c.b16 %v190, %v188
  %v237 = vpack.c.b16 %v191, %v189
  %v238 = vpack.c.b16 %v194, %v192
  %v239 = vpack.c.b16 %v195, %v193
  %v240 = vpack.c.b16 %v198, %v196
  %v241 = vpack.c.b16 %v199, %v197
  %v242 = vpack.c.b16 %v202, %v200
  %v243 = vpack.c.b16 %v203, %v201
  %v244 = vpack.c.b16 %v206, %v204
  %v245 = vpack.c.b16 %v207, %v205
  %v246 = vpack.c.b16 %v210, %v208
  %v247 = vpack.c.b16 %v211, %v209
  %v248 = vpack.c.b16 %v214, %v212
  %v249 = vpack.c.b16 %v215, %v213
  %v250 = vpack.c.b16 %v218, %v216
  %v251 = vpack.c.b16 %v219, %v217
  %284 = vmatprep.subr.bf16.mxu0 %v221
  %285 = vmatpush1.bf16.msra.mxu0 %v220
  %286 = vmatprep.subr.bf16.mxu0 %v223
  %287 = vmatpush1.bf16.msra.mxu0 %v222
  %288 = vmatprep.subr.bf16.mxu0 %v225
  %289 = vmatpush1.bf16.msra.mxu0 %v224
  %290 = vmatprep.subr.bf16.mxu0 %v227
  %291 = vmatpush1.bf16.msra.mxu0 %v226
  %292 = vmatprep.subr.bf16.mxu0 %v229
  %293 = vmatpush1.bf16.msra.mxu0 %v228
  %294 = vmatprep.subr.bf16.mxu0 %v231
  %295 = vmatpush1.bf16.msra.mxu0 %v230
  %296 = vmatprep.subr.bf16.mxu0 %v233
  %297 = vmatpush1.bf16.msra.mxu0 %v232
  %298 = vmatprep.subr.bf16.mxu0 %v235
  %299 = vmatpush1.bf16.msra.mxu0 %v234
  %300 = vmatprep.subr.bf16.mxu0 %v237
  %301 = vmatpush1.bf16.msra.mxu0 %v236
  %302 = vmatprep.subr.bf16.mxu0 %v239
  %303 = vmatpush1.bf16.msra.mxu0 %v238
  %304 = vmatprep.subr.bf16.mxu0 %v241
  %305 = vmatpush1.bf16.msra.mxu0 %v240
  %306 = vmatprep.subr.bf16.mxu0 %v243
  %307 = vmatpush1.bf16.msra.mxu0 %v242
  %308 = vmatprep.subr.bf16.mxu0 %v245
  %309 = vmatpush1.bf16.msra.mxu0 %v244
  %310 = vmatprep.subr.bf16.mxu0 %v247
  %311 = vmatpush1.bf16.msra.mxu0 %v246
  %312 = vmatprep.subr.bf16.mxu0 %v249
  %313 = vmatpush1.bf16.msra.mxu0 %v248
  %314 = vmatprep.subr.bf16.mxu0 %v251
  %315 = vmatpush1.bf16.msra.mxu0 %v250
  %316 = vmatprep.mubr.bf16.mxu0 %v109
  %317 = vmatmul.mubr.bf16.gmra.mrb[0].mxu0 %v108
  %v318 = vpop.f32.mrb[0].mxu0
  %v319 = vadd.f32 %v77, %v318
  %v320 = vpop.f32.mrb[0].mxu0
  %v321 = vadd.f32 %v81, %v320
  %v322 = vpop.f32.mrb[0].mxu0
  %v323 = vadd.f32 %v77, %v322
  %v324 = vpop.f32.mrb[0].mxu0
  %v325 = vadd.f32 %v81, %v324
  %326 = vmatprep.mubr.bf16.mxu0 %v111
  %327 = vmatmul.mubr.bf16.gmra.mrb[0].mxu0 %v110
  %v328 = vpop.f32.mrb[0].mxu0
  %v329 = vadd.f32 %v77, %v328
  %v330 = vpop.f32.mrb[0].mxu0
  %v331 = vadd.f32 %v81, %v330
  %v332 = vpop.f32.mrb[0].mxu0
  %v333 = vadd.f32 %v77, %v332
  %v334 = vpop.f32.mrb[0].mxu0
  %v335 = vadd.f32 %v81, %v334
  %336 = vmatprep.mubr.bf16.mxu0 %v113
  %337 = vmatmul.mubr.bf16.gmra.mrb[0].mxu0 %v112
  %v338 = vpop.f32.mrb[0].mxu0
  %v339 = vadd.f32 %v77, %v338
  %v340 = vpop.f32.mrb[0].mxu0
  %v341 = vadd.f32 %v81, %v340
  %v342 = vpop.f32.mrb[0].mxu0
  %v343 = vadd.f32 %v77, %v342
  %v344 = vpop.f32.mrb[0].mxu0
  %v345 = vadd.f32 %v81, %v344
  %346 = vmatprep.mubr.bf16.mxu0 %v115
  %347 = vmatmul.mubr.bf16.gmra.mrb[0].mxu0 %v114
  %v348 = vpop.f32.mrb[0].mxu0
  %v349 = vadd.f32 %v77, %v348
  %v350 = vpop.f32.mrb[0].mxu0
  %v351 = vadd.f32 %v81, %v350
  %v352 = vpop.f32.mrb[0].mxu0
  %v353 = vadd.f32 %v77, %v352
  %v354 = vpop.f32.mrb[0].mxu0
  %v355 = vadd.f32 %v81, %v354
  %356 = vdwg.mxu0
  %v357 = vld [vmem:[%s3] sm:$0xff]
  %v358 = vld [vmem:[%s3 + $0x8] sm:$0xff]
  %v359 = vld [vmem:[%s3 + $0x10] sm:$0xff]
  %v360 = vld [vmem:[%s3 + $0x18] sm:$0xff]
  %v361 = vld [vmem:[%s3 + $0x20] sm:$0xff]
  %v362 = vld [vmem:[%s3 + $0x28] sm:$0xff]
  %v363 = vld [vmem:[%s3 + $0x30] sm:$0xff]
  %v364 = vld [vmem:[%s3 + $0x38] sm:$0xff]
  %v365 = vld [vmem:[%s4] sm:$0x1]
  %v366 = vlaneseq
  %v367 = vand.u32 %v366, 127
  %v368 = vadd.s32 %v367, 128
  %vm369 = vcmp.lt.s32.totalorder %v367, 0
  %v370 = vsub.s32 0, %v367
  %v371 = vsel %vm369, %v370, %v367
  %v372 = vshrl.u32 %v371, 6
  %v373 = vand.u32 %v371, 63
  %v374 = vsub.s32 0, %v373
  %v375 = vsel %vm369, %v374, %v373
  %vm376 = vcmp.lt.s32.totalorder %v368, 0
  %v377 = vsub.s32 0, %v368
  %v378 = vsel %vm376, %v377, %v368
  %v379 = vshrl.u32 %v378, 6
  %v380 = vand.u32 %v378, 63
  %v381 = vsub.s32 0, %v380
  %v382 = vsel %vm376, %v381, %v380
  %vm383 = vcmp.ne.s32.totalorder %v375, 0
  %vm384 = vcmp.ne.s32.totalorder %v382, 0
  %vm385 = vcmp.lt.s32.totalorder %v375, 0
  %vm386 = vcmp.lt.s32.totalorder %v382, 0
  %vm387 = vmand %vm385, %vm383
  %vm388 = vmand %vm386, %vm384
  %v389 = vadd.s32 %v375, 64
  %v390 = vadd.s32 %v382, 64
  %v391 = vsel %vm387, %v389, %v375
  %v392 = vsel %vm388, %v390, %v382
  %vm393 = vcmp.lt.s32.totalorder %v391, 32
  %vm394 = vcmp.lt.s32.totalorder %v392, 32
  %v395 = vsel %vm393, 1, 0
  %v396 = vsel %vm394, 1, 0
  %vm397 = vcmp.eq.s32.totalorder %v395, 1
  %vm398 = vcmp.eq.s32.totalorder %v396, 1
  %v399 = vsel %vm397, %v319, %v353
  %v400 = vsel %vm398, %v321, %v355
  %v409 = vunpack.c.l.b16 %v357
  %v410 = vunpack.c.h.b16 %v357
  %v411 = vunpack.c.l.b16 %v358
  %v412 = vunpack.c.h.b16 %v358
  %v413 = vunpack.c.l.b16 %v359
  %v414 = vunpack.c.h.b16 %v359
  %v415 = vunpack.c.l.b16 %v360
  %v416 = vunpack.c.h.b16 %v360
  %v417 = vunpack.c.l.b16 %v361
  %v418 = vunpack.c.h.b16 %v361
  %v419 = vunpack.c.l.b16 %v362
  %v420 = vunpack.c.h.b16 %v362
  %v421 = vunpack.c.l.b16 %v363
  %v422 = vunpack.c.h.b16 %v363
  %v423 = vunpack.c.l.b16 %v364
  %v424 = vunpack.c.h.b16 %v364
  %v425 = vpack.c.b16 %v411, %v409
  %v426 = vpack.c.b16 %v412, %v410
  %v427 = vpack.c.b16 %v415, %v413
  %v428 = vpack.c.b16 %v416, %v414
  %v429 = vpack.c.b16 %v419, %v417
  %v430 = vpack.c.b16 %v420, %v418
  %v431 = vpack.c.b16 %v423, %v421
  %v432 = vpack.c.b16 %v424, %v422
  %vm441 = vcmask 523264
  %v443 = vsel %vm441, 0, 0
  %445 = vmatprep.subr.bf16.mxu0 %v426
  %446 = vmatpush1.bf16.msra.mxu0 %v425
  %447 = vmatprep.subr.bf16.mxu0 %v428
  %448 = vmatpush1.bf16.msra.mxu0 %v427
  %449 = vmatprep.subr.bf16.mxu0 %v430
  %450 = vmatpush1.bf16.msra.mxu0 %v429
  %451 = vmatprep.subr.bf16.mxu0 %v432
  %452 = vmatpush1.bf16.msra.mxu0 %v431
  %453 = vmatprep.subr.bf16.mxu0 0
  %454 = vmatpush1.bf16.msra.mxu0 0
  %455 = vmatprep.subr.bf16.mxu0 0
  %456 = vmatpush1.bf16.msra.mxu0 0
  %457 = vmatprep.subr.bf16.mxu0 0
  %458 = vmatpush1.bf16.msra.mxu0 0
  %459 = vmatprep.subr.bf16.mxu0 0
  %460 = vmatpush1.bf16.msra.mxu0 0
  %461 = vmatprep.subr.bf16.mxu0 0
  %462 = vmatpush1.bf16.msra.mxu0 0
  %463 = vmatprep.subr.bf16.mxu0 0
  %464 = vmatpush1.bf16.msra.mxu0 0
  %465 = vmatprep.subr.bf16.mxu0 0
  %466 = vmatpush1.bf16.msra.mxu0 0
  %467 = vmatprep.subr.bf16.mxu0 0
  %468 = vmatpush1.bf16.msra.mxu0 0
  %469 = vmatprep.subr.bf16.mxu0 0
  %470 = vmatpush1.bf16.msra.mxu0 0
  %471 = vmatprep.subr.bf16.mxu0 0
  %472 = vmatpush1.bf16.msra.mxu0 0
  %473 = vmatprep.subr.bf16.mxu0 0
  %474 = vmatpush1.bf16.msra.mxu0 0
  %475 = vmatprep.subr.bf16.mxu0 0
  %476 = vmatpush1.bf16.msra.mxu0 0
  %477 = vmatprep.mubr.bf16.mxu0 0
  %478 = vmatmul.mubr.bf16.gmra.mrb[0].mxu0 %v443
  %v479 = vpop.f32.mrb[0].mxu0
  %v480 = vadd.f32 0.0, %v479
  %v481 = vpop.f32.mrb[0].mxu0
  %v482 = vadd.f32 0.0, %v481
  %v483 = vpop.f32.mrb[0].mxu0
  %v484 = vpop.f32.mrb[0].mxu0
  %485 = vdwg.mxu0
  %v486 = vadd.f32 %v399, %v480
  %v487 = vadd.f32 %v400, %v482
  %v488 = vxor.u32 %v486, 2147483648
  %v489 = vmul.f32 %v488, 1.442695
  %v490 = vpow.pop %v489
  %v491 = vadd.f32 %v490, 1.0
  %v492 = vrcp.pop %v491
  %v493 = vmul.f32 1.0, %v492
  %v494 = vtanh.pop %v487
  %v495 = vxor.u32 %v487, 2147483648
  %v496 = vmul.f32 %v495, 1.442695
  %v497 = vpow.pop %v496
  %v498 = vadd.f32 %v497, 1.0
  %v499 = vrcp.pop %v498
  %v500 = vmul.f32 1.0, %v499
  %v501 = vmul.f32 %v493, 0.0
  %v502 = vmul.f32 %v493, %v494
  %504 = vrot.lane.b32.xlu0 %v502, 64
  %v505 = vpop.permute.xlu0 %504
  %v507 = vadd.f32 %v501, %v505
  %v508 = vtanh.pop %v507
  %v509 = vmul.f32 %v500, %v508
  %v511 = vlaneseq
  %v512 = vshrl.u32 %v511, 7
  %v513 = vsub.s32 0, %v512
  %v514 = vrot.slane %v365, %v513
  %515 = vrot.lane.b32.xlu0 %v514, 64
  %v516 = vpop.permute.xlu0 %515
  %v518 = vmul.f32 %v509, %v516
  %520 = vrot.lane.b32.xlu0 %v518, 64
  %v521 = vpop.permute.xlu0 %520
  %vm523 = vcmask 261120
  %v524 = vsel %vm523, %v521, 0.0
  %525 = vadd.xlane.f32.xlu0 %v524
  %v526 = vpop.xlane.xlu0 %525
  %527 = vrot.lane.b32.xlu0 %v518, 32
  %v528 = vpop.permute.xlu0 %527
  %v530 = vsel %vm523, %v528, 0.0
  %531 = vadd.xlane.f32.xlu0 %v530
  %v532 = vpop.xlane.xlu0 %531
  %v533 = vsel %vm397, %v323, %v349
  %v534 = vsel %vm398, %v325, %v351
  %v535 = vpack.c.bf16 %v509, %v509
  %537 = vrot.lane.b32.xlu0 %v535, 64
  %v538 = vpop.permute.xlu0 %537
  %v540 = vsel %vm441, %v538, 0
  %542 = vmatprep.subr.bf16.mxu0 %v426
  %543 = vmatpush1.bf16.msra.mxu0 %v425
  %544 = vmatprep.subr.bf16.mxu0 %v428
  %545 = vmatpush1.bf16.msra.mxu0 %v427
  %546 = vmatprep.subr.bf16.mxu0 %v430
  %547 = vmatpush1.bf16.msra.mxu0 %v429
  %548 = vmatprep.subr.bf16.mxu0 %v432
  %549 = vmatpush1.bf16.msra.mxu0 %v431
  %550 = vmatprep.subr.bf16.mxu0 0
  %551 = vmatpush1.bf16.msra.mxu0 0
  %552 = vmatprep.subr.bf16.mxu0 0
  %553 = vmatpush1.bf16.msra.mxu0 0
  %554 = vmatprep.subr.bf16.mxu0 0
  %555 = vmatpush1.bf16.msra.mxu0 0
  %556 = vmatprep.subr.bf16.mxu0 0
  %557 = vmatpush1.bf16.msra.mxu0 0
  %558 = vmatprep.subr.bf16.mxu0 0
  %559 = vmatpush1.bf16.msra.mxu0 0
  %560 = vmatprep.subr.bf16.mxu0 0
  %561 = vmatpush1.bf16.msra.mxu0 0
  %562 = vmatprep.subr.bf16.mxu0 0
  %563 = vmatpush1.bf16.msra.mxu0 0
  %564 = vmatprep.subr.bf16.mxu0 0
  %565 = vmatpush1.bf16.msra.mxu0 0
  %566 = vmatprep.subr.bf16.mxu0 0
  %567 = vmatpush1.bf16.msra.mxu0 0
  %568 = vmatprep.subr.bf16.mxu0 0
  %569 = vmatpush1.bf16.msra.mxu0 0
  %570 = vmatprep.subr.bf16.mxu0 0
  %571 = vmatpush1.bf16.msra.mxu0 0
  %572 = vmatprep.subr.bf16.mxu0 0
  %573 = vmatpush1.bf16.msra.mxu0 0
  %574 = vmatprep.mubr.bf16.mxu0 0
  %575 = vmatmul.mubr.bf16.gmra.mrb[0].mxu0 %v540
  %v576 = vpop.f32.mrb[0].mxu0
  %v577 = vadd.f32 0.0, %v576
  %v578 = vpop.f32.mrb[0].mxu0
  %v579 = vadd.f32 0.0, %v578
  %v580 = vpop.f32.mrb[0].mxu0
  %v581 = vpop.f32.mrb[0].mxu0
  %582 = vdwg.mxu0
  %v583 = vadd.f32 %v533, %v577
  %v584 = vadd.f32 %v534, %v579
  %v585 = vxor.u32 %v583, 2147483648
  %v586 = vmul.f32 %v585, 1.442695
  %v587 = vpow.pop %v586
  %v588 = vadd.f32 %v587, 1.0
  %v589 = vrcp.pop %v588
  %v590 = vmul.f32 1.0, %v589
  %v591 = vtanh.pop %v584
  %v592 = vxor.u32 %v584, 2147483648
  %v593 = vmul.f32 %v592, 1.442695
  %v594 = vpow.pop %v593
  %v595 = vadd.f32 %v594, 1.0
  %v596 = vrcp.pop %v595
  %v597 = vmul.f32 1.0, %v596
  %v598 = vmul.f32 %v590, %v507
  %v599 = vmul.f32 %v590, %v591
  %601 = vrot.lane.b32.xlu0 %v599, 64
  %v602 = vpop.permute.xlu0 %601
  %v604 = vadd.f32 %v598, %v602
  %v605 = vtanh.pop %v604
  %v606 = vmul.f32 %v597, %v605
  %v607 = vmul.f32 %v606, %v516
  %609 = vrot.lane.b32.xlu0 %v607, 64
  %v610 = vpop.permute.xlu0 %609
  %v612 = vsel %vm523, %v610, 0.0
  %613 = vadd.xlane.f32.xlu0 %v612
  %v614 = vpop.xlane.xlu0 %613
  %615 = vrot.lane.b32.xlu0 %v607, 32
  %v616 = vpop.permute.xlu0 %615
  %v618 = vsel %vm523, %v616, 0.0
  %619 = vadd.xlane.f32.xlu0 %v618
  %v620 = vpop.xlane.xlu0 %619
  %v621 = vsel %vm397, %v329, %v343
  %v622 = vsel %vm398, %v331, %v345
  %v623 = vpack.c.bf16 %v606, %v606
  %625 = vrot.lane.b32.xlu0 %v623, 64
  %v626 = vpop.permute.xlu0 %625
  %v628 = vsel %vm441, %v626, 0
  %630 = vmatprep.subr.bf16.mxu0 %v426
  %631 = vmatpush1.bf16.msra.mxu0 %v425
  %632 = vmatprep.subr.bf16.mxu0 %v428
  %633 = vmatpush1.bf16.msra.mxu0 %v427
  %634 = vmatprep.subr.bf16.mxu0 %v430
  %635 = vmatpush1.bf16.msra.mxu0 %v429
  %636 = vmatprep.subr.bf16.mxu0 %v432
  %637 = vmatpush1.bf16.msra.mxu0 %v431
  %638 = vmatprep.subr.bf16.mxu0 0
  %639 = vmatpush1.bf16.msra.mxu0 0
  %640 = vmatprep.subr.bf16.mxu0 0
  %641 = vmatpush1.bf16.msra.mxu0 0
  %642 = vmatprep.subr.bf16.mxu0 0
  %643 = vmatpush1.bf16.msra.mxu0 0
  %644 = vmatprep.subr.bf16.mxu0 0
  %645 = vmatpush1.bf16.msra.mxu0 0
  %646 = vmatprep.subr.bf16.mxu0 0
  %647 = vmatpush1.bf16.msra.mxu0 0
  %648 = vmatprep.subr.bf16.mxu0 0
  %649 = vmatpush1.bf16.msra.mxu0 0
  %650 = vmatprep.subr.bf16.mxu0 0
  %651 = vmatpush1.bf16.msra.mxu0 0
  %652 = vmatprep.subr.bf16.mxu0 0
  %653 = vmatpush1.bf16.msra.mxu0 0
  %654 = vmatprep.subr.bf16.mxu0 0
  %655 = vmatpush1.bf16.msra.mxu0 0
  %656 = vmatprep.subr.bf16.mxu0 0
  %657 = vmatpush1.bf16.msra.mxu0 0
  %658 = vmatprep.subr.bf16.mxu0 0
  %659 = vmatpush1.bf16.msra.mxu0 0
  %660 = vmatprep.subr.bf16.mxu0 0
  %661 = vmatpush1.bf16.msra.mxu0 0
  %662 = vmatprep.mubr.bf16.mxu0 0
  %663 = vmatmul.mubr.bf16.gmra.mrb[0].mxu0 %v628
  %v664 = vpop.f32.mrb[0].mxu0
  %v665 = vadd.f32 0.0, %v664
  %v666 = vpop.f32.mrb[0].mxu0
  %v667 = vadd.f32 0.0, %v666
  %v668 = vpop.f32.mrb[0].mxu0
  %v669 = vpop.f32.mrb[0].mxu0
  %670 = vdwg.mxu0
  %v671 = vadd.f32 %v621, %v665
  %v672 = vadd.f32 %v622, %v667
  %v673 = vxor.u32 %v671, 2147483648
  %v674 = vmul.f32 %v673, 1.442695
  %v675 = vpow.pop %v674
  %v676 = vadd.f32 %v675, 1.0
  %v677 = vrcp.pop %v676
  %v678 = vmul.f32 1.0, %v677
  %v679 = vtanh.pop %v672
  %v680 = vxor.u32 %v672, 2147483648
  %v681 = vmul.f32 %v680, 1.442695
  %v682 = vpow.pop %v681
  %v683 = vadd.f32 %v682, 1.0
  %v684 = vrcp.pop %v683
  %v685 = vmul.f32 1.0, %v684
  %v686 = vmul.f32 %v678, %v604
  %v687 = vmul.f32 %v678, %v679
  %689 = vrot.lane.b32.xlu0 %v687, 64
  %v690 = vpop.permute.xlu0 %689
  %v692 = vadd.f32 %v686, %v690
  %v693 = vtanh.pop %v692
  %v694 = vmul.f32 %v685, %v693
  %v695 = vmul.f32 %v694, %v516
  %697 = vrot.lane.b32.xlu0 %v695, 64
  %v698 = vpop.permute.xlu0 %697
  %v700 = vsel %vm523, %v698, 0.0
  %701 = vadd.xlane.f32.xlu0 %v700
  %v702 = vpop.xlane.xlu0 %701
  %703 = vrot.lane.b32.xlu0 %v695, 32
  %v704 = vpop.permute.xlu0 %703
  %v706 = vsel %vm523, %v704, 0.0
  %707 = vadd.xlane.f32.xlu0 %v706
  %v708 = vpop.xlane.xlu0 %707
  %v709 = vsel %vm397, %v333, %v339
  %v710 = vsel %vm398, %v335, %v341
  %v711 = vpack.c.bf16 %v694, %v694
  %713 = vrot.lane.b32.xlu0 %v711, 64
  %v714 = vpop.permute.xlu0 %713
  %v716 = vsel %vm441, %v714, 0
  %718 = vmatprep.subr.bf16.mxu0 %v426
  %719 = vmatpush1.bf16.msra.mxu0 %v425
  %720 = vmatprep.subr.bf16.mxu0 %v428
  %721 = vmatpush1.bf16.msra.mxu0 %v427
  %722 = vmatprep.subr.bf16.mxu0 %v430
  %723 = vmatpush1.bf16.msra.mxu0 %v429
  %724 = vmatprep.subr.bf16.mxu0 %v432
  %725 = vmatpush1.bf16.msra.mxu0 %v431
  %726 = vmatprep.subr.bf16.mxu0 0
  %727 = vmatpush1.bf16.msra.mxu0 0
  %728 = vmatprep.subr.bf16.mxu0 0
  %729 = vmatpush1.bf16.msra.mxu0 0
  %730 = vmatprep.subr.bf16.mxu0 0
  %731 = vmatpush1.bf16.msra.mxu0 0
  %732 = vmatprep.subr.bf16.mxu0 0
  %733 = vmatpush1.bf16.msra.mxu0 0
  %734 = vmatprep.subr.bf16.mxu0 0
  %735 = vmatpush1.bf16.msra.mxu0 0
  %736 = vmatprep.subr.bf16.mxu0 0
  %737 = vmatpush1.bf16.msra.mxu0 0
  %738 = vmatprep.subr.bf16.mxu0 0
  %739 = vmatpush1.bf16.msra.mxu0 0
  %740 = vmatprep.subr.bf16.mxu0 0
  %741 = vmatpush1.bf16.msra.mxu0 0
  %742 = vmatprep.subr.bf16.mxu0 0
  %743 = vmatpush1.bf16.msra.mxu0 0
  %744 = vmatprep.subr.bf16.mxu0 0
  %745 = vmatpush1.bf16.msra.mxu0 0
  %746 = vmatprep.subr.bf16.mxu0 0
  %747 = vmatpush1.bf16.msra.mxu0 0
  %748 = vmatprep.subr.bf16.mxu0 0
  %749 = vmatpush1.bf16.msra.mxu0 0
  %750 = vmatprep.mubr.bf16.mxu0 0
  %751 = vmatmul.mubr.bf16.gmra.mrb[0].mxu0 %v716
  %v752 = vpop.f32.mrb[0].mxu0
  %v753 = vadd.f32 0.0, %v752
  %v754 = vpop.f32.mrb[0].mxu0
  %v755 = vadd.f32 0.0, %v754
  %v756 = vpop.f32.mrb[0].mxu0
  %v757 = vpop.f32.mrb[0].mxu0
  %758 = vdwg.mxu0
  %v759 = vadd.f32 %v709, %v753
  %v760 = vadd.f32 %v710, %v755
  %v761 = vxor.u32 %v759, 2147483648
  %v762 = vmul.f32 %v761, 1.442695
  %v763 = vpow.pop %v762
  %v764 = vadd.f32 %v763, 1.0
  %v765 = vrcp.pop %v764
  %v766 = vmul.f32 1.0, %v765
  %v767 = vtanh.pop %v760
  %v768 = vxor.u32 %v760, 2147483648
  %v769 = vmul.f32 %v768, 1.442695
  %v770 = vpow.pop %v769
  %v771 = vadd.f32 %v770, 1.0
  %v772 = vrcp.pop %v771
  %v773 = vmul.f32 1.0, %v772
  %v774 = vmul.f32 %v766, %v692
  %v775 = vmul.f32 %v766, %v767
  %777 = vrot.lane.b32.xlu0 %v775, 64
  %v778 = vpop.permute.xlu0 %777
  %v780 = vadd.f32 %v774, %v778
  %v781 = vtanh.pop %v780
  %v782 = vmul.f32 %v773, %v781
  %v783 = vmul.f32 %v782, %v516
  %785 = vrot.lane.b32.xlu0 %v783, 64
  %v786 = vpop.permute.xlu0 %785
  %v788 = vsel %vm523, %v786, 0.0
  %789 = vadd.xlane.f32.xlu0 %v788
  %v790 = vpop.xlane.xlu0 %789
  %791 = vrot.lane.b32.xlu0 %v783, 32
  %v792 = vpop.permute.xlu0 %791
  %v794 = vsel %vm523, %v792, 0.0
  %795 = vadd.xlane.f32.xlu0 %v794
  %v796 = vpop.xlane.xlu0 %795
  %v797 = vsel %vm397, %v339, %v333
  %v798 = vsel %vm398, %v341, %v335
  %v799 = vpack.c.bf16 %v782, %v782
  %801 = vrot.lane.b32.xlu0 %v799, 64
  %v802 = vpop.permute.xlu0 %801
  %v804 = vsel %vm441, %v802, 0
  %806 = vmatprep.subr.bf16.mxu0 %v426
  %807 = vmatpush1.bf16.msra.mxu0 %v425
  %808 = vmatprep.subr.bf16.mxu0 %v428
  %809 = vmatpush1.bf16.msra.mxu0 %v427
  %810 = vmatprep.subr.bf16.mxu0 %v430
  %811 = vmatpush1.bf16.msra.mxu0 %v429
  %812 = vmatprep.subr.bf16.mxu0 %v432
  %813 = vmatpush1.bf16.msra.mxu0 %v431
  %814 = vmatprep.subr.bf16.mxu0 0
  %815 = vmatpush1.bf16.msra.mxu0 0
  %816 = vmatprep.subr.bf16.mxu0 0
  %817 = vmatpush1.bf16.msra.mxu0 0
  %818 = vmatprep.subr.bf16.mxu0 0
  %819 = vmatpush1.bf16.msra.mxu0 0
  %820 = vmatprep.subr.bf16.mxu0 0
  %821 = vmatpush1.bf16.msra.mxu0 0
  %822 = vmatprep.subr.bf16.mxu0 0
  %823 = vmatpush1.bf16.msra.mxu0 0
  %824 = vmatprep.subr.bf16.mxu0 0
  %825 = vmatpush1.bf16.msra.mxu0 0
  %826 = vmatprep.subr.bf16.mxu0 0
  %827 = vmatpush1.bf16.msra.mxu0 0
  %828 = vmatprep.subr.bf16.mxu0 0
  %829 = vmatpush1.bf16.msra.mxu0 0
  %830 = vmatprep.subr.bf16.mxu0 0
  %831 = vmatpush1.bf16.msra.mxu0 0
  %832 = vmatprep.subr.bf16.mxu0 0
  %833 = vmatpush1.bf16.msra.mxu0 0
  %834 = vmatprep.subr.bf16.mxu0 0
  %835 = vmatpush1.bf16.msra.mxu0 0
  %836 = vmatprep.subr.bf16.mxu0 0
  %837 = vmatpush1.bf16.msra.mxu0 0
  %838 = vmatprep.mubr.bf16.mxu0 0
  %839 = vmatmul.mubr.bf16.gmra.mrb[0].mxu0 %v804
  %v840 = vpop.f32.mrb[0].mxu0
  %v841 = vadd.f32 0.0, %v840
  %v842 = vpop.f32.mrb[0].mxu0
  %v843 = vadd.f32 0.0, %v842
  %v844 = vpop.f32.mrb[0].mxu0
  %v845 = vpop.f32.mrb[0].mxu0
  %846 = vdwg.mxu0
  %v847 = vadd.f32 %v797, %v841
  %v848 = vadd.f32 %v798, %v843
  %v849 = vxor.u32 %v847, 2147483648
  %v850 = vmul.f32 %v849, 1.442695
  %v851 = vpow.pop %v850
  %v852 = vadd.f32 %v851, 1.0
  %v853 = vrcp.pop %v852
  %v854 = vmul.f32 1.0, %v853
  %v855 = vtanh.pop %v848
  %v856 = vxor.u32 %v848, 2147483648
  %v857 = vmul.f32 %v856, 1.442695
  %v858 = vpow.pop %v857
  %v859 = vadd.f32 %v858, 1.0
  %v860 = vrcp.pop %v859
  %v861 = vmul.f32 1.0, %v860
  %v862 = vmul.f32 %v854, %v780
  %v863 = vmul.f32 %v854, %v855
  %865 = vrot.lane.b32.xlu0 %v863, 64
  %v866 = vpop.permute.xlu0 %865
  %v868 = vadd.f32 %v862, %v866
  %v869 = vtanh.pop %v868
  %v870 = vmul.f32 %v861, %v869
  %v871 = vmul.f32 %v870, %v516
  %873 = vrot.lane.b32.xlu0 %v871, 64
  %v874 = vpop.permute.xlu0 %873
  %v876 = vsel %vm523, %v874, 0.0
  %877 = vadd.xlane.f32.xlu0 %v876
  %v878 = vpop.xlane.xlu0 %877
  %879 = vrot.lane.b32.xlu0 %v871, 32
  %v880 = vpop.permute.xlu0 %879
  %v882 = vsel %vm523, %v880, 0.0
  %883 = vadd.xlane.f32.xlu0 %v882
  %v884 = vpop.xlane.xlu0 %883
  %v885 = vsel %vm397, %v343, %v329
  %v886 = vsel %vm398, %v345, %v331
  %v887 = vpack.c.bf16 %v870, %v870
  %889 = vrot.lane.b32.xlu0 %v887, 64
  %v890 = vpop.permute.xlu0 %889
  %v892 = vsel %vm441, %v890, 0
  %894 = vmatprep.subr.bf16.mxu0 %v426
  %895 = vmatpush1.bf16.msra.mxu0 %v425
  %896 = vmatprep.subr.bf16.mxu0 %v428
  %897 = vmatpush1.bf16.msra.mxu0 %v427
  %898 = vmatprep.subr.bf16.mxu0 %v430
  %899 = vmatpush1.bf16.msra.mxu0 %v429
  %900 = vmatprep.subr.bf16.mxu0 %v432
  %901 = vmatpush1.bf16.msra.mxu0 %v431
  %902 = vmatprep.subr.bf16.mxu0 0
  %903 = vmatpush1.bf16.msra.mxu0 0
  %904 = vmatprep.subr.bf16.mxu0 0
  %905 = vmatpush1.bf16.msra.mxu0 0
  %906 = vmatprep.subr.bf16.mxu0 0
  %907 = vmatpush1.bf16.msra.mxu0 0
  %908 = vmatprep.subr.bf16.mxu0 0
  %909 = vmatpush1.bf16.msra.mxu0 0
  %910 = vmatprep.subr.bf16.mxu0 0
  %911 = vmatpush1.bf16.msra.mxu0 0
  %912 = vmatprep.subr.bf16.mxu0 0
  %913 = vmatpush1.bf16.msra.mxu0 0
  %914 = vmatprep.subr.bf16.mxu0 0
  %915 = vmatpush1.bf16.msra.mxu0 0
  %916 = vmatprep.subr.bf16.mxu0 0
  %917 = vmatpush1.bf16.msra.mxu0 0
  %918 = vmatprep.subr.bf16.mxu0 0
  %919 = vmatpush1.bf16.msra.mxu0 0
  %920 = vmatprep.subr.bf16.mxu0 0
  %921 = vmatpush1.bf16.msra.mxu0 0
  %922 = vmatprep.subr.bf16.mxu0 0
  %923 = vmatpush1.bf16.msra.mxu0 0
  %924 = vmatprep.subr.bf16.mxu0 0
  %925 = vmatpush1.bf16.msra.mxu0 0
  %926 = vmatprep.mubr.bf16.mxu0 0
  %927 = vmatmul.mubr.bf16.gmra.mrb[0].mxu0 %v892
  %v928 = vpop.f32.mrb[0].mxu0
  %v929 = vadd.f32 0.0, %v928
  %v930 = vpop.f32.mrb[0].mxu0
  %v931 = vadd.f32 0.0, %v930
  %v932 = vpop.f32.mrb[0].mxu0
  %v933 = vpop.f32.mrb[0].mxu0
  %934 = vdwg.mxu0
  %v935 = vadd.f32 %v885, %v929
  %v936 = vadd.f32 %v886, %v931
  %v937 = vxor.u32 %v935, 2147483648
  %v938 = vmul.f32 %v937, 1.442695
  %v939 = vpow.pop %v938
  %v940 = vadd.f32 %v939, 1.0
  %v941 = vrcp.pop %v940
  %v942 = vmul.f32 1.0, %v941
  %v943 = vtanh.pop %v936
  %v944 = vxor.u32 %v936, 2147483648
  %v945 = vmul.f32 %v944, 1.442695
  %v946 = vpow.pop %v945
  %v947 = vadd.f32 %v946, 1.0
  %v948 = vrcp.pop %v947
  %v949 = vmul.f32 1.0, %v948
  %v950 = vmul.f32 %v942, %v868
  %v951 = vmul.f32 %v942, %v943
  %953 = vrot.lane.b32.xlu0 %v951, 64
  %v954 = vpop.permute.xlu0 %953
  %v956 = vadd.f32 %v950, %v954
  %v957 = vtanh.pop %v956
  %v958 = vmul.f32 %v949, %v957
  %v959 = vmul.f32 %v958, %v516
  %961 = vrot.lane.b32.xlu0 %v959, 64
  %v962 = vpop.permute.xlu0 %961
  %v964 = vsel %vm523, %v962, 0.0
  %965 = vadd.xlane.f32.xlu0 %v964
  %v966 = vpop.xlane.xlu0 %965
  %967 = vrot.lane.b32.xlu0 %v959, 32
  %v968 = vpop.permute.xlu0 %967
  %v970 = vsel %vm523, %v968, 0.0
  %971 = vadd.xlane.f32.xlu0 %v970
  %v972 = vpop.xlane.xlu0 %971
  %v973 = vsel %vm397, %v349, %v323
  %v974 = vsel %vm398, %v351, %v325
  %v975 = vpack.c.bf16 %v958, %v958
  %977 = vrot.lane.b32.xlu0 %v975, 64
  %v978 = vpop.permute.xlu0 %977
  %v980 = vsel %vm441, %v978, 0
  %982 = vmatprep.subr.bf16.mxu0 %v426
  %983 = vmatpush1.bf16.msra.mxu0 %v425
  %984 = vmatprep.subr.bf16.mxu0 %v428
  %985 = vmatpush1.bf16.msra.mxu0 %v427
  %986 = vmatprep.subr.bf16.mxu0 %v430
  %987 = vmatpush1.bf16.msra.mxu0 %v429
  %988 = vmatprep.subr.bf16.mxu0 %v432
  %989 = vmatpush1.bf16.msra.mxu0 %v431
  %990 = vmatprep.subr.bf16.mxu0 0
  %991 = vmatpush1.bf16.msra.mxu0 0
  %992 = vmatprep.subr.bf16.mxu0 0
  %993 = vmatpush1.bf16.msra.mxu0 0
  %994 = vmatprep.subr.bf16.mxu0 0
  %995 = vmatpush1.bf16.msra.mxu0 0
  %996 = vmatprep.subr.bf16.mxu0 0
  %997 = vmatpush1.bf16.msra.mxu0 0
  %998 = vmatprep.subr.bf16.mxu0 0
  %999 = vmatpush1.bf16.msra.mxu0 0
  %1000 = vmatprep.subr.bf16.mxu0 0
  %1001 = vmatpush1.bf16.msra.mxu0 0
  %1002 = vmatprep.subr.bf16.mxu0 0
  %1003 = vmatpush1.bf16.msra.mxu0 0
  %1004 = vmatprep.subr.bf16.mxu0 0
  %1005 = vmatpush1.bf16.msra.mxu0 0
  %1006 = vmatprep.subr.bf16.mxu0 0
  %1007 = vmatpush1.bf16.msra.mxu0 0
  %1008 = vmatprep.subr.bf16.mxu0 0
  %1009 = vmatpush1.bf16.msra.mxu0 0
  %1010 = vmatprep.subr.bf16.mxu0 0
  %1011 = vmatpush1.bf16.msra.mxu0 0
  %1012 = vmatprep.subr.bf16.mxu0 0
  %1013 = vmatpush1.bf16.msra.mxu0 0
  %1014 = vmatprep.mubr.bf16.mxu0 0
  %1015 = vmatmul.mubr.bf16.gmra.mrb[0].mxu0 %v980
  %v1016 = vpop.f32.mrb[0].mxu0
  %v1017 = vadd.f32 0.0, %v1016
  %v1018 = vpop.f32.mrb[0].mxu0
  %v1019 = vadd.f32 0.0, %v1018
  %v1020 = vpop.f32.mrb[0].mxu0
  %v1021 = vpop.f32.mrb[0].mxu0
  %1022 = vdwg.mxu0
  %v1023 = vadd.f32 %v973, %v1017
  %v1024 = vadd.f32 %v974, %v1019
  %v1025 = vxor.u32 %v1023, 2147483648
  %v1026 = vmul.f32 %v1025, 1.442695
  %v1027 = vpow.pop %v1026
  %v1028 = vadd.f32 %v1027, 1.0
  %v1029 = vrcp.pop %v1028
  %v1030 = vmul.f32 1.0, %v1029
  %v1031 = vtanh.pop %v1024
  %v1032 = vxor.u32 %v1024, 2147483648
  %v1033 = vmul.f32 %v1032, 1.442695
  %v1034 = vpow.pop %v1033
  %v1035 = vadd.f32 %v1034, 1.0
  %v1036 = vrcp.pop %v1035
  %v1037 = vmul.f32 1.0, %v1036
  %v1038 = vmul.f32 %v1030, %v956
  %v1039 = vmul.f32 %v1030, %v1031
  %1041 = vrot.lane.b32.xlu0 %v1039, 64
  %v1042 = vpop.permute.xlu0 %1041
  %v1044 = vadd.f32 %v1038, %v1042
  %v1045 = vtanh.pop %v1044
  %v1046 = vmul.f32 %v1037, %v1045
  %v1047 = vmul.f32 %v1046, %v516
  %1049 = vrot.lane.b32.xlu0 %v1047, 64
  %v1050 = vpop.permute.xlu0 %1049
  %v1052 = vsel %vm523, %v1050, 0.0
  %1053 = vadd.xlane.f32.xlu0 %v1052
  %v1054 = vpop.xlane.xlu0 %1053
  %1055 = vrot.lane.b32.xlu0 %v1047, 32
  %v1056 = vpop.permute.xlu0 %1055
  %v1058 = vsel %vm523, %v1056, 0.0
  %1059 = vadd.xlane.f32.xlu0 %v1058
  %v1060 = vpop.xlane.xlu0 %1059
  %v1061 = vsel %vm397, %v353, %v319
  %v1062 = vsel %vm398, %v355, %v321
  %v1063 = vpack.c.bf16 %v1046, %v1046
  %1065 = vrot.lane.b32.xlu0 %v1063, 64
  %v1066 = vpop.permute.xlu0 %1065
  %v1068 = vsel %vm441, %v1066, 0
  %1070 = vmatprep.subr.bf16.mxu0 %v426
  %1071 = vmatpush1.bf16.msra.mxu0 %v425
  %1072 = vmatprep.subr.bf16.mxu0 %v428
  %1073 = vmatpush1.bf16.msra.mxu0 %v427
  %1074 = vmatprep.subr.bf16.mxu0 %v430
  %1075 = vmatpush1.bf16.msra.mxu0 %v429
  %1076 = vmatprep.subr.bf16.mxu0 %v432
  %1077 = vmatpush1.bf16.msra.mxu0 %v431
  %1078 = vmatprep.subr.bf16.mxu0 0
  %1079 = vmatpush1.bf16.msra.mxu0 0
  %1080 = vmatprep.subr.bf16.mxu0 0
  %1081 = vmatpush1.bf16.msra.mxu0 0
  %1082 = vmatprep.subr.bf16.mxu0 0
  %1083 = vmatpush1.bf16.msra.mxu0 0
  %1084 = vmatprep.subr.bf16.mxu0 0
  %1085 = vmatpush1.bf16.msra.mxu0 0
  %1086 = vmatprep.subr.bf16.mxu0 0
  %1087 = vmatpush1.bf16.msra.mxu0 0
  %1088 = vmatprep.subr.bf16.mxu0 0
  %1089 = vmatpush1.bf16.msra.mxu0 0
  %1090 = vmatprep.subr.bf16.mxu0 0
  %1091 = vmatpush1.bf16.msra.mxu0 0
  %1092 = vmatprep.subr.bf16.mxu0 0
  %1093 = vmatpush1.bf16.msra.mxu0 0
  %1094 = vmatprep.subr.bf16.mxu0 0
  %1095 = vmatpush1.bf16.msra.mxu0 0
  %1096 = vmatprep.subr.bf16.mxu0 0
  %1097 = vmatpush1.bf16.msra.mxu0 0
  %1098 = vmatprep.subr.bf16.mxu0 0
  %1099 = vmatpush1.bf16.msra.mxu0 0
  %1100 = vmatprep.subr.bf16.mxu0 0
  %1101 = vmatpush1.bf16.msra.mxu0 0
  %1102 = vmatprep.mubr.bf16.mxu0 0
  %1103 = vmatmul.mubr.bf16.gmra.mrb[0].mxu0 %v1068
  %v1104 = vpop.f32.mrb[0].mxu0
  %v1105 = vadd.f32 0.0, %v1104
  %v1106 = vpop.f32.mrb[0].mxu0
  %v1107 = vadd.f32 0.0, %v1106
  %v1108 = vpop.f32.mrb[0].mxu0
  %v1109 = vpop.f32.mrb[0].mxu0
  %1110 = vdwg.mxu0
  %v1111 = vadd.f32 %v1061, %v1105
  %v1112 = vadd.f32 %v1062, %v1107
  %v1113 = vxor.u32 %v1111, 2147483648
  %v1114 = vmul.f32 %v1113, 1.442695
  %v1115 = vpow.pop %v1114
  %v1116 = vadd.f32 %v1115, 1.0
  %v1117 = vrcp.pop %v1116
  %v1118 = vmul.f32 1.0, %v1117
  %v1119 = vtanh.pop %v1112
  %v1120 = vxor.u32 %v1112, 2147483648
  %v1121 = vmul.f32 %v1120, 1.442695
  %v1122 = vpow.pop %v1121
  %v1123 = vadd.f32 %v1122, 1.0
  %v1124 = vrcp.pop %v1123
  %v1125 = vmul.f32 1.0, %v1124
  %v1126 = vmul.f32 %v1118, %v1044
  %v1127 = vmul.f32 %v1118, %v1119
  %1129 = vrot.lane.b32.xlu0 %v1127, 64
  %v1130 = vpop.permute.xlu0 %1129
  %v1132 = vadd.f32 %v1126, %v1130
  %v1133 = vtanh.pop %v1132
  %v1134 = vmul.f32 %v1125, %v1133
  %v1135 = vmul.f32 %v1134, %v516
  %1137 = vrot.lane.b32.xlu0 %v1135, 64
  %v1138 = vpop.permute.xlu0 %1137
  %v1140 = vsel %vm523, %v1138, 0.0
  %1141 = vadd.xlane.f32.xlu0 %v1140
  %v1142 = vpop.xlane.xlu0 %1141
  %1143 = vrot.lane.b32.xlu0 %v1135, 32
  %v1144 = vpop.permute.xlu0 %1143
  %v1146 = vsel %vm523, %v1144, 0.0
  %1147 = vadd.xlane.f32.xlu0 %v1146
  %v1148 = vpop.xlane.xlu0 %1147
  %1150 = vrot.lane.b32.xlu0 %v509, 64
  %v1151 = vpop.permute.xlu0 %1150
  %1154 = vrot.lane.b32.xlu0 %v1134, 64
  %v1155 = vpop.permute.xlu0 %1154
  %v1157 = vsel %vm523, %v1151, %v1155
  %1159 = vrot.lane.b32.xlu0 %v606, 64
  %v1160 = vpop.permute.xlu0 %1159
  %1163 = vrot.lane.b32.xlu0 %v1046, 64
  %v1164 = vpop.permute.xlu0 %1163
  %v1166 = vsel %vm523, %v1160, %v1164
  %1168 = vrot.lane.b32.xlu0 %v694, 64
  %v1169 = vpop.permute.xlu0 %1168
  %1172 = vrot.lane.b32.xlu0 %v958, 64
  %v1173 = vpop.permute.xlu0 %1172
  %v1175 = vsel %vm523, %v1169, %v1173
  %1177 = vrot.lane.b32.xlu0 %v782, 64
  %v1178 = vpop.permute.xlu0 %1177
  %1181 = vrot.lane.b32.xlu0 %v870, 64
  %v1182 = vpop.permute.xlu0 %1181
  %v1184 = vsel %vm523, %v1178, %v1182
  %v1185 = vsel %vm523, %v1182, %v1178
  %v1186 = vsel %vm523, %v1173, %v1169
  %v1187 = vsel %vm523, %v1164, %v1160
  %v1188 = vsel %vm523, %v1155, %v1151
  %v1189 = vadd.f32 %v526, %v1148
  %v1190 = vadd.f32 %v614, %v1060
  %v1191 = vadd.f32 %v702, %v972
  %v1192 = vadd.f32 %v790, %v884
  %v1193 = vadd.f32 %v878, %v796
  %v1194 = vadd.f32 %v966, %v708
  %v1195 = vadd.f32 %v1054, %v620
  %v1196 = vadd.f32 %v1142, %v532
  %v1197 = vld [vmem:[#allocation2] sm:$0x1]
  %v1199 = vlaneseq
  %v1200 = vshrl.u32 %v1199, 7
  %v1201 = vsub.s32 0, %v1200
  %v1202 = vrot.slane %v1197, %v1201
  %v1204 = vadd.f32 %v1189, %v1202
  %v1205 = vadd.f32 %v1190, %v1202
  %v1206 = vadd.f32 %v1191, %v1202
  %v1207 = vadd.f32 %v1192, %v1202
  %v1208 = vadd.f32 %v1193, %v1202
  %v1209 = vadd.f32 %v1194, %v1202
  %v1210 = vadd.f32 %v1195, %v1202
  %v1211 = vadd.f32 %v1196, %v1202
  %vm1212 = vcmask 7168
  %v1213 = vsel %vm1212, %v1204, -inf
  %v1214 = vsel %vm1212, %v1205, -inf
  %v1215 = vsel %vm1212, %v1206, -inf
  %v1216 = vsel %vm1212, %v1207, -inf
  %v1217 = vsel %vm1212, %v1208, -inf
  %v1218 = vmax.f32 %v1213, %v1217
  %v1219 = vsel %vm1212, %v1209, -inf
  %v1220 = vmax.f32 %v1214, %v1219
  %v1221 = vsel %vm1212, %v1210, -inf
  %v1222 = vmax.f32 %v1215, %v1221
  %v1223 = vsel %vm1212, %v1211, -inf
  %v1224 = vmax.f32 %v1216, %v1223
  %v1225 = vmax.f32 %v1218, %v1220
  %v1226 = vmax.f32 %v1222, %v1224
  %v1227 = vmax.f32 %v1225, %v1226
  %v1228 = vsub.f32 %v1204, %v1227
  %v1229 = vsub.f32 %v1205, %v1227
  %v1230 = vsub.f32 %v1206, %v1227
  %v1231 = vsub.f32 %v1207, %v1227
  %v1232 = vsub.f32 %v1208, %v1227
  %v1233 = vsub.f32 %v1209, %v1227
  %v1234 = vsub.f32 %v1210, %v1227
  %v1235 = vsub.f32 %v1211, %v1227
  %v1236 = vmul.f32 %v1228, 1.442695
  %v1237 = vpow.pop %v1236
  %v1238 = vmul.f32 %v1229, 1.442695
  %v1239 = vpow.pop %v1238
  %v1240 = vmul.f32 %v1230, 1.442695
  %v1241 = vpow.pop %v1240
  %v1242 = vmul.f32 %v1231, 1.442695
  %v1243 = vpow.pop %v1242
  %v1244 = vmul.f32 %v1232, 1.442695
  %v1245 = vpow.pop %v1244
  %v1246 = vmul.f32 %v1233, 1.442695
  %v1247 = vpow.pop %v1246
  %v1248 = vmul.f32 %v1234, 1.442695
  %v1249 = vpow.pop %v1248
  %v1250 = vmul.f32 %v1235, 1.442695
  %v1251 = vpow.pop %v1250
  %v1252 = vsel %vm1212, %v1237, 0.0
  %v1253 = vsel %vm1212, %v1239, 0.0
  %v1254 = vadd.f32 %v1252, %v1253
  %v1255 = vsel %vm1212, %v1241, 0.0
  %v1256 = vadd.f32 %v1254, %v1255
  %v1257 = vsel %vm1212, %v1243, 0.0
  %v1258 = vadd.f32 %v1256, %v1257
  %v1259 = vsel %vm1212, %v1245, 0.0
  %v1260 = vadd.f32 %v1258, %v1259
  %v1261 = vsel %vm1212, %v1247, 0.0
  %v1262 = vadd.f32 %v1260, %v1261
  %v1263 = vsel %vm1212, %v1249, 0.0
  %v1264 = vadd.f32 %v1262, %v1263
  %v1265 = vsel %vm1212, %v1251, 0.0
  %v1266 = vadd.f32 %v1264, %v1265
  %v1267 = vrcp.pop %v1266
  %v1268 = vmul.f32 %v1237, %v1267
  %v1269 = vmul.f32 %v1239, %v1267
  %v1270 = vmul.f32 %v1241, %v1267
  %v1271 = vmul.f32 %v1243, %v1267
  %v1272 = vmul.f32 %v1245, %v1267
  %v1273 = vmul.f32 %v1247, %v1267
  %v1274 = vmul.f32 %v1249, %v1267
  %v1275 = vmul.f32 %v1251, %v1267
  %1277 = vset.pattern.permute.xlu0 0
  %1278 = vperm.xlu0 %1277, %v1268
  %v1279 = vpop.permute.xlu0 %1278
  %1282 = vset.pattern.permute.xlu0 0
  %1283 = vperm.xlu0 %1282, %v1269
  %v1284 = vpop.permute.xlu0 %1283
  %1287 = vset.pattern.permute.xlu0 0
  %1288 = vperm.xlu0 %1287, %v1270
  %v1289 = vpop.permute.xlu0 %1288
  %1292 = vset.pattern.permute.xlu0 0
  %1293 = vperm.xlu0 %1292, %v1271
  %v1294 = vpop.permute.xlu0 %1293
  %1297 = vset.pattern.permute.xlu0 0
  %1298 = vperm.xlu0 %1297, %v1272
  %v1299 = vpop.permute.xlu0 %1298
  %1302 = vset.pattern.permute.xlu0 0
  %1303 = vperm.xlu0 %1302, %v1273
  %v1304 = vpop.permute.xlu0 %1303
  %1307 = vset.pattern.permute.xlu0 0
  %1308 = vperm.xlu0 %1307, %v1274
  %v1309 = vpop.permute.xlu0 %1308
  %1312 = vset.pattern.permute.xlu0 0
  %1313 = vperm.xlu0 %1312, %v1275
  %v1314 = vpop.permute.xlu0 %1313
  %v1316 = vmul.f32 %v1279, %v1157
  %v1317 = vmul.f32 %v1284, %v1166
  %v1318 = vmul.f32 %v1289, %v1175
  %v1319 = vmul.f32 %v1294, %v1184
  %v1320 = vmul.f32 %v1299, %v1185
  %v1321 = vmul.f32 %v1304, %v1186
  %v1322 = vmul.f32 %v1309, %v1187
  %v1323 = vmul.f32 %v1314, %v1188
  %v1324 = vsel %vm441, %v1316, 0.0
  %v1325 = vsel %vm441, %v1317, 0.0
  %v1326 = vadd.f32 %v1324, %v1325
  %v1327 = vsel %vm441, %v1318, 0.0
  %v1328 = vadd.f32 %v1326, %v1327
  %v1329 = vsel %vm441, %v1319, 0.0
  %v1330 = vadd.f32 %v1328, %v1329
  %v1331 = vsel %vm441, %v1320, 0.0
  %v1332 = vadd.f32 %v1330, %v1331
  %v1333 = vsel %vm441, %v1321, 0.0
  %v1334 = vadd.f32 %v1332, %v1333
  %v1335 = vsel %vm441, %v1322, 0.0
  %v1336 = vadd.f32 %v1334, %v1335
  %v1337 = vsel %vm441, %v1323, 0.0
  %v1338 = vadd.f32 %v1336, %v1337
  %v1339 = vld [vmem:[%s6] sm:$0xff]
  %v1340 = vld [vmem:[%s6 + $0x8] sm:$0xff]
  %v1341 = vld [vmem:[%s6 + $0x10] sm:$0xff]
  %v1342 = vld [vmem:[%s6 + $0x18] sm:$0xff]
  %v1343 = vld [vmem:[%s6 + $0x20] sm:$0xff]
  %v1344 = vld [vmem:[%s6 + $0x28] sm:$0xff]
  %v1345 = vld [vmem:[%s6 + $0x30] sm:$0xff]
  %v1346 = vld [vmem:[%s6 + $0x38] sm:$0xff]
  %v1347 = vld [vmem:[%s7] sm:$0x1]
  %v1349 = vlaneseq
  %v1350 = vshrl.u32 %v1349, 7
  %v1351 = vsub.s32 0, %v1350
  %v1352 = vrot.slane %v1347, %v1351
  %v1355 = vsel %vm441, %v1338, 0
  %1357 = vmatprep.subr.mxu0 0.0
  %1358 = vmatpush1.msra.mxu0 %v1339
  %1359 = vmatprep.subr.mxu0 0.0
  %1360 = vmatpush1.msra.mxu0 %v1340
  %1361 = vmatprep.subr.mxu0 0.0
  %1362 = vmatpush1.msra.mxu0 %v1341
  %1363 = vmatprep.subr.mxu0 0.0
  %1364 = vmatpush1.msra.mxu0 %v1342
  %1365 = vmatprep.subr.mxu0 0.0
  %1366 = vmatpush1.msra.mxu0 %v1343
  %1367 = vmatprep.subr.mxu0 0.0
  %1368 = vmatpush1.msra.mxu0 %v1344
  %1369 = vmatprep.subr.mxu0 0.0
  %1370 = vmatpush1.msra.mxu0 %v1345
  %1371 = vmatprep.subr.mxu0 0.0
  %1372 = vmatpush1.msra.mxu0 %v1346
  %1373 = vmatprep.subr.mxu0 0.0
  %1374 = vmatpush1.msra.mxu0 0.0
  %1375 = vmatprep.subr.mxu0 0.0
  %1376 = vmatpush1.msra.mxu0 0.0
  %1377 = vmatprep.subr.mxu0 0.0
  %1378 = vmatpush1.msra.mxu0 0.0
  %1379 = vmatprep.subr.mxu0 0.0
  %1380 = vmatpush1.msra.mxu0 0.0
  %1381 = vmatprep.subr.mxu0 0.0
  %1382 = vmatpush1.msra.mxu0 0.0
  %1383 = vmatprep.subr.mxu0 0.0
  %1384 = vmatpush1.msra.mxu0 0.0
  %1385 = vmatprep.subr.mxu0 0.0
  %1386 = vmatpush1.msra.mxu0 0.0
  %1387 = vmatprep.subr.mxu0 0.0
  %1388 = vmatpush1.msra.mxu0 0.0
  %1389 = vmatprep.subr.mxu0 0.0
  %1390 = vmatpush1.msra.mxu0 0.0
  %1391 = vmatprep.subr.mxu0 0.0
  %1392 = vmatpush1.msra.mxu0 0.0
  %1393 = vmatprep.subr.mxu0 0.0
  %1394 = vmatpush1.msra.mxu0 0.0
  %1395 = vmatprep.subr.mxu0 0.0
  %1396 = vmatpush1.msra.mxu0 0.0
  %1397 = vmatprep.subr.mxu0 0.0
  %1398 = vmatpush1.msra.mxu0 0.0
  %1399 = vmatprep.subr.mxu0 0.0
  %1400 = vmatpush1.msra.mxu0 0.0
  %1401 = vmatprep.subr.mxu0 0.0
  %1402 = vmatpush1.msra.mxu0 0.0
  %1403 = vmatprep.subr.mxu0 0.0
  %1404 = vmatpush1.msra.mxu0 0.0
  %1405 = vmatprep.subr.mxu0 0.0
  %1406 = vmatpush1.msra.mxu0 0.0
  %1407 = vmatprep.subr.mxu0 0.0
  %1408 = vmatpush1.msra.mxu0 0.0
  %1409 = vmatprep.subr.mxu0 0.0
  %1410 = vmatpush1.msra.mxu0 0.0
  %1411 = vmatprep.subr.mxu0 0.0
  %1412 = vmatpush1.msra.mxu0 0.0
  %1413 = vmatprep.subr.mxu0 0.0
  %1414 = vmatpush1.msra.mxu0 0.0
  %1415 = vmatprep.subr.mxu0 0.0
  %1416 = vmatpush1.msra.mxu0 0.0
  %1417 = vmatprep.subr.mxu0 0.0
  %1418 = vmatpush1.msra.mxu0 0.0
  %1419 = vmatprep.subr.mxu0 0.0
  %1420 = vmatpush1.msra.mxu0 0.0
  %1421 = vmatprep.mubr.f32.mxu0 0.0
  %1422 = vmatmul.mubr.f32.gmra.mrb[0].mxu0 %v1355
  %v1423 = vpop.f32.mrb[0].mxu0
  %v1424 = vadd.f32 %v1352, %v1423
  %v1425 = vpop.f32.mrb[0].mxu0
  %1426 = vdwg.mxu0
  %1427 = vst [vmem:[%s8] sm:$0xff] %v1424
  // Predicated region
  $region34: #{model_forward.1} parent=0 // pred_check
    _
  $region35: #{model_forward.1} parent=0 // pred_check_branch
    %1429 = sbr.rel (0) target = $region37
  $region36: #{model_forward.1} parent=0 // pred_region
    _
  $region37: #{model_forward.1} parent=0 // pred_fallthru
    _
  // Predicated region
  $region38: #{model_forward.1} parent=0 // pred_check
    _
  $region39: #{model_forward.1} parent=0 // pred_check_branch
    %1431 = sbr.rel (0) target = $region41
  $region40: #{model_forward.1} parent=0 // pred_region
    _
  $region41: #{model_forward.1} parent=0 // pred_fallthru
    _

</llo_original>
